<compile_context>
chip_gen: v7x
topology: tpu7x:2x2x1
jax: 0.10.0
libtpu: 0.0.40
codegen_flags: <defaults>
</compile_context>

<pallas_src>
import jax
import jax.numpy as jnp
from jax.experimental import pallas as pl
from jax.experimental.pallas import tpu as pltpu


# Safe on v7x (64 MiB physical VMEM per TensorCore) and already well past the
# per-step block size where the HBM roofline saturates on v5e/v6e (128 MiB).
_BLOCK_BUDGET_BYTES = 24 * 1024 * 1024
_VMEM_LIMIT_BYTES = 44 * 1024 * 1024


def _round_up(n, m):
    return ((n + m - 1) // m) * m


# ---------------------------------------------------------------------------
# Kernels
# ---------------------------------------------------------------------------
def _kernel_single_pass(x_ref, w_ref, const_ref, out_ref):
    # x_ref: (TB, C, T) input tile (NCT, time on lanes)
    # w_ref: (C, T)     folded weights (include the 1/T_out mean)
    # const_ref: (1,)   SMEM scalar: lin_w @ conv_b + lin_b
    # out_ref: (TB, 1)
    x = x_ref[...].astype(jnp.float32)
    per_chan = jnp.sum(x * w_ref[...], axis=2)                 # (TB, C) lane reduce
    out_ref[...] = (jnp.sum(per_chan, axis=1, keepdims=True)
                    + const_ref[0]).astype(out_ref.dtype)


def _kernel_time_reduce(x_ref, w_ref, const_ref, out_ref, acc_ref):
    # Same as above, but time is tiled: acc_ref (TB, C) f32 is resident across
    # the "arbitrary" time grid axis; the cross-channel reduce + const add and
    # the (TB, 1) store happen only on the last time step.
    t = pl.program_id(1)

    @pl.when(t == 0)
    def _init():
        acc_ref[...] = jnp.zeros_like(acc_ref)

    x = x_ref[...].astype(jnp.float32)
    acc_ref[...] += jnp.sum(x * w_ref[...], axis=2)            # (TB, C)

    @pl.when(t == pl.num_programs(1) - 1)
    def _finish():
        out_ref[...] = (jnp.sum(acc_ref[...], axis=1, keepdims=True)
                        + const_ref[0]).astype(out_ref.dtype)


# ---------------------------------------------------------------------------
# VMEM-budget-driven tile selection
# ---------------------------------------------------------------------------
def _batch_tile_candidates(B):
    if B % 8 != 0:
        return [B]                       # full-dim block is always layout-legal
    return [tb for tb in range(B, 0, -8) if B % tb == 0]


def _time_tile_candidates(Tp):
    # Tp is a multiple of 128; candidates are its multiples-of-128 divisors.
    return [tt for tt in range(Tp, 0, -128) if Tp % tt == 0]


def _footprint_bytes(TB, TT, C, x_bytes, reduce_time):
    lanes = _round_up(TT, 128)
    c_pad = _round_up(C, 8)
    x_blk = TB * c_pad * lanes * x_bytes          # one x buffer
    w_blk = c_pad * lanes * 4                     # one w buffer
    out_blk = _round_up(TB, 8) * 128 * 4          # one (padded) out buffer
    # sum(x * w, axis=-1) materialises an f32 product block (plus a cast copy
    # when x is not f32) before the lane reduce; budget for it explicitly.
    interm = TB * c_pad * lanes * 4 * (1 if x_bytes >= 4 else 2)
    acc = _round_up(TB, 8) * _round_up(C, 128) * 4 if reduce_time else 0
    return 2 * (x_blk + w_blk + out_blk) + interm + acc


def _select_tiles(B, C, T, x_bytes, budget):
    """Returns (TB, TT, reduce_time)."""
    batch_cands = _batch_tile_candidates(B)

    def prefer(fits, tt):
        # v7x has 2 TensorCores: keep >= 2 "parallel" batch tiles whenever each
        # step still moves >= 1 MiB of x (so per-step overhead stays amortised).
        multi = [tb for tb in fits
                 if B // tb >= 2
                 and tb * C * _round_up(tt, 128) * x_bytes >= (1 << 20)]
        return multi[0] if multi else fits[0]

    # Path A: single full-T block per batch tile.
    fits = [tb for tb in batch_cands
            if _footprint_bytes(tb, T, C, x_bytes, False) <= budget]
    if fits:
        tiny = B * C * T * x_bytes + C * T * 4 <= (1 << 20)
        return (fits[0] if tiny else prefer(fits, T)), T, False

    # Path B: tile time; largest TT (multiple of 128) that fits wins.
    Tp = _round_up(T, 128)
    time_cands = _time_tile_candidates(Tp)
    for tt in time_cands:
        fits = [tb for tb in batch_cands
                if _footprint_bytes(tb, tt, C, x_bytes, True) <= budget]
        if fits:
            return prefer(fits, tt), tt, True
    # Last resort: smallest legal tiles (budget is an estimate; let Mosaic try).
    return batch_cands[-1], time_cands[-1], True


# ---------------------------------------------------------------------------
# Wrapper
# ---------------------------------------------------------------------------
def stats_predictor_forward(x_nct, conv_w, conv_b, lin_w, lin_b):
    """x_nct: (B, adim, T), NCT exactly like the PyTorch module.  Returns (B, 1)."""
    B, C, T = x_nct.shape
    K = conv_w.shape[-1]
    pad = (K - 1) // 2
    T_out = T + 2 * pad - K + 1          # conv output length (== T for odd K)

    # ---- fold conv + zero-padding boundary + 1/T_out mean + linear head ----
    lw = lin_w.reshape(-1).astype(jnp.float32)                        # (C,)
    v = jnp.einsum('o,oik->ki', lw, conv_w.astype(jnp.float32))       # (K, C)
    i_idx = jnp.arange(T)[None, :]
    k_idx = jnp.arange(K)[:, None]
    mask = ((i_idx >= k_idx - pad) &
            (i_idx <= (T_out - 1) + k_idx - pad)).astype(jnp.float32)  # (K, T)
    w_fold = jnp.einsum('kc,kt->ct', v, mask) / jnp.float32(T_out)     # (C, T)
    const = (lw @ conv_b.astype(jnp.float32)
             + lin_b.reshape(-1).astype(jnp.float32)[0]).reshape(1)    # (1,) SMEM

    x_bytes = jnp.dtype(x_nct.dtype).itemsize
    TB, TT, reduce_time = _select_tiles(B, C, T, x_bytes, _BLOCK_BUDGET_BYTES)

    x_in, w_in, T_used = x_nct, w_fold, T
    if reduce_time and (T % TT != 0):
        # Zero-pad time (exact: the padded w_fold columns are zero).
        T_used = _round_up(T, TT)
        x_in = jnp.pad(x_nct, ((0, 0), (0, 0), (0, T_used - T)))
        w_in = jnp.pad(w_fold, ((0, 0), (0, T_used - T)))

    const_spec = pl.BlockSpec(memory_space=pltpu.MemorySpace.SMEM)

    if not reduce_time:
        kernel = _kernel_single_pass
        grid = (B // TB,)
        in_specs = [pl.BlockSpec((TB, C, T_used), lambda b: (b, 0, 0)),
                    pl.BlockSpec((C, T_used), lambda b: (0, 0)),
                    const_spec]
        out_specs = pl.BlockSpec((TB, 1), lambda b: (b, 0))
        scratch_shapes = []
        dim_sem = ("parallel",)
    else:
        kernel = _kernel_time_reduce
        grid = (B // TB, T_used // TT)
        in_specs = [pl.BlockSpec((TB, C, TT), lambda b, t: (b, 0, t)),
                    pl.BlockSpec((C, TT), lambda b, t: (0, t)),
                    const_spec]
        out_specs = pl.BlockSpec((TB, 1), lambda b, t: (b, 0))
        scratch_shapes = [pltpu.VMEM((TB, C), jnp.float32)]
        dim_sem = ("parallel", "arbitrary")

    return pl.pallas_call(
        kernel,
        out_shape=jax.ShapeDtypeStruct((B, 1), x_nct.dtype),
        grid_spec=pltpu.PrefetchScalarGridSpec(
            num_scalar_prefetch=0,
            grid=grid,
            in_specs=in_specs,
            out_specs=out_specs,
            scratch_shapes=scratch_shapes,
        ),
        compiler_params=pltpu.CompilerParams(
            dimension_semantics=dim_sem,
            vmem_limit_bytes=_VMEM_LIMIT_BYTES,
        ),
    )(x_in, w_in, const)


def reference_forward(x_nct, conv_w, conv_b, lin_w, lin_b):
    """Pure-JAX reference matching torch.nn semantics."""
    K = conv_w.shape[-1]
    pad = (K - 1) // 2
    y = jax.lax.conv_general_dilated(
        x_nct, conv_w, window_strides=(1,), padding=[(pad, pad)],
        dimension_numbers=('NCH', 'OIH', 'NCH'))
    y = y + conv_b[None, :, None]
    m = jnp.mean(y, axis=2)
    return m @ lin_w.T + lin_b[None, :]


if __name__ == "__main__":
    # Small but tiling-exercising shapes: batch 16 -> two 8-row batch tiles on
    # the "parallel" axis; T=384 stays a single full-T contiguous block.
    B, ADIM, T, K = 16, 96, 384, 5

    key = jax.random.PRNGKey(0)
    kx, kcw, kcb, klw, klb = jax.random.split(key, 5)

    x = jax.random.normal(kx, (B, ADIM, T), dtype=jnp.float32)            # NCT like PyTorch
    conv_w = 0.05 * jax.random.normal(kcw, (ADIM, ADIM, K), jnp.float32)  # (out, in, K)
    conv_b = 0.05 * jax.random.normal(kcb, (ADIM,), jnp.float32)
    lin_w = 0.05 * jax.random.normal(klw, (1, ADIM), jnp.float32)         # (out=1, in=adim)
    lin_b = 0.05 * jax.random.normal(klb, (1,), jnp.float32)

    out = stats_predictor_forward(x, conv_w, conv_b, lin_w, lin_b)
    out = jax.block_until_ready(out)

    ref = reference_forward(x, conv_w, conv_b, lin_w, lin_b)
    assert out.shape == (B, 1), out.shape
    assert jnp.allclose(out, ref, atol=1e-4, rtol=1e-4), (out, ref)

    print("KERNEL_OK")
</pallas_src>

<mosaic_0001>
module attributes {stable_mosaic.version = 11 : i64} {
  func.func @_kernel_single_pass(%arg0: i32, %arg1: memref<8x96x384xf32, #tpu.memory_space<vmem>>, %arg2: memref<96x384xf32, #tpu.memory_space<vmem>>, %arg3: memref<1xf32, #tpu.memory_space<smem>>, %arg4: memref<8x1xf32, #tpu.memory_space<vmem>>) attributes {dimension_semantics = [#tpu.dimension_semantics<parallel>], iteration_bounds = array<i64: 2>, scalar_prefetch = 0 : i64, scratch_operands = 0 : i64, tpu.core_type = #tpu.core_type<tc>, window_params = [{transform_indices = @transform_0, window_bounds = array<i64: 8, 96, 384>}, {pipeline_mode = #tpu.pipeline_mode<synchronous>, transform_indices = @transform_1, window_bounds = array<i64: 96, 384>}, {transform_indices = @transform_2, window_bounds = array<i64: 1>}, {transform_indices = @transform_3, window_bounds = array<i64: 8, 1>}]} {
    %c0 = arith.constant 0 : index
    %c0_0 = arith.constant 0 : index
    %c0_1 = arith.constant 0 : index
    %0 = vector.load %arg1[%c0, %c0_0, %c0_1] : memref<8x96x384xf32, #tpu.memory_space<vmem>>, vector<8x96x384xf32>
    %c0_2 = arith.constant 0 : index
    %c0_3 = arith.constant 0 : index
    %1 = vector.load %arg2[%c0_2, %c0_3] : memref<96x384xf32, #tpu.memory_space<vmem>>, vector<96x384xf32>
    %2 = vector.shape_cast %1 : vector<96x384xf32> to vector<1x96x384xf32>
    %3 = vector.broadcast %2 : vector<1x96x384xf32> to vector<8x96x384xf32>
    %4 = arith.mulf %0, %3 : vector<8x96x384xf32>
    %cst = arith.constant dense<0.000000e+00> : vector<8x96xf32>
    %5 = vector.multi_reduction <add>, %4, %cst [2] : vector<8x96x384xf32> to vector<8x96xf32>
    %cst_4 = arith.constant dense<0.000000e+00> : vector<8xf32>
    %6 = vector.multi_reduction <add>, %5, %cst_4 [1] : vector<8x96xf32> to vector<8xf32>
    %7 = vector.shape_cast %6 : vector<8xf32> to vector<8x1xf32>
    %c0_5 = arith.constant 0 : index
    %8 = memref.load %arg3[%c0_5] : memref<1xf32, #tpu.memory_space<smem>>
    %9 = vector.broadcast %8 : f32 to vector<8x1xf32>
    %10 = arith.addf %7, %9 : vector<8x1xf32>
    %c0_6 = arith.constant 0 : index
    %c0_7 = arith.constant 0 : index
    %11 = vector.load %arg4[%c0_6, %c0_7] : memref<8x1xf32, #tpu.memory_space<vmem>>, vector<8x1xf32>
    tpu.vector_store %arg4[%c0_6, %c0_7], %10 {strides = array<i32>} : memref<8x1xf32, #tpu.memory_space<vmem>>, vector<8x1xf32>,
    return
  }
  func.func @transform_0(%arg0: i32) -> (i32, i32, i32) {
    %c0_i32 = arith.constant 0 : i32
    %c0_i32_0 = arith.constant 0 : i32
    %c0_i32_1 = arith.constant 0 : i32
    return %arg0, %c0_i32, %c0_i32_0 : i32, i32, i32
  }
  func.func @transform_1(%arg0: i32) -> (i32, i32) {
    %c0_i32 = arith.constant 0 : i32
    %c0_i32_0 = arith.constant 0 : i32
    %c0_i32_1 = arith.constant 0 : i32
    return %c0_i32, %c0_i32_0 : i32, i32
  }
  func.func @transform_2(%arg0: i32) -> i32 {
    %c0_i32 = arith.constant 0 : i32
    %c0_i32_0 = arith.constant 0 : i32
    return %c0_i32 : i32
  }
  func.func @transform_3(%arg0: i32) -> (i32, i32) {
    %c0_i32 = arith.constant 0 : i32
    %c0_i32_0 = arith.constant 0 : i32
    return %arg0, %c0_i32 : i32, i32
  }
}

</mosaic_0001>

<llo_original>
// kernel: tpu_custom_call.1
$region0: #{tpu_custom_call.1}
  #allocation0 [shape = 'u32[]', space=smem, size = 0x4, offset = 0x4, fixed_abs, tag = 'smem constant byte address 0x4 - core index']
  #allocation1 [shape = 'u32[144,128]{1,0:T(1,128)}', space=vmem, size = 0x12000, scoped, tag = 'internal scratch']
  #allocation2 [shape = 'f32[1]{0:T(128)S(6)}', space=smem, size = 0x200, scoped, tag = 'scoped memory for tpu_custom_call.1']
  %s0 = inlined_call_operand.hbm [shape: f32[16,96,384], index: 0, kind: input, shape index: {}]
  %s1 = inlined_call_operand.hbm [shape: f32[96,384], index: 1, kind: input, shape index: {}]
  %s2 = inlined_call_operand.<no memory space> [shape: f32[1], index: 2, kind: input, shape index: {}]
  %s3 = inlined_call_operand.vmem [shape: f32[16,1], index: 3, kind: output, shape index: {}]
  %s4 = sld [smem:[#allocation0]]
  $region53: #{tpu_custom_call.1} parent=0
    _
  %s6 = ssub.s32 1, %s4
  %s7 = scalar_select 0, %s6, %s4
  %8 = sst [smem:[#allocation2]] %s2
  $region1: #{tpu_custom_call.1} parent=0
    #allocation3 [shape = 'u8[2359296]{0}', space=vmem, size = 0x240000, scoped, tag = 'input window, operand 0']
    #allocation4 [shape = 's32[2]{0}', space=sflag, size = 0x8, scoped, tag = 'scoped memory for tpu_custom_call.1']
    #allocation5 [shape = 'u8[147456]{0}', space=vmem, size = 0x24000, scoped, tag = 'input window, operand 1, single buffered']
    #allocation6 [shape = 's32[1]{0}', space=sflag, size = 0x4, scoped, tag = 'scoped memory for tpu_custom_call.1']
    %9 = vsyncpa [#allocation4], 0
    %s10 = scalar_lea.sflag [#allocation4], 1
    %11 = vsyncpa %s10, 0
    %12 = vsyncpa [#allocation6], 0
    loop: start=0, step=1, limit=4
    $region2: #{tpu_custom_call.1} parent=1 // loop_pre_header
      _
    $region3: #{tpu_custom_call.1} parent=1 // loop_header
      %s14 = sphi 0, %s18
      %p15 = scmp.ge.s32.totalorder %s14, 4
      %s24 = sphi 0, %s26
      %s27 = sphi 0, %s24
      %s28 = sphi 0, %s27
      %s44 = sphi 0, %s28
      %s48 = sphi 0, %s48
      %s50 = sphi 0, %s48
      %s51 = sphi 0, %s50
      %s65 = sphi 0, %s51
      %s69 = sphi 0, %s69
      %s71 = sphi 0, %s69
      %s72 = sphi 0, %s71
      %s86 = sphi 0, %s72
      %s92 = sphi 0, %s94
      %s95 = sphi 0, %s92
      %s96 = sphi 0, %s95
      %s112 = sphi 0, %s96
    $region4: #{tpu_custom_call.1} parent=1 // loop_header_branch
      %17 = sbr.rel (%p15) target = $region8
    $region5: #{tpu_custom_call.1} parent=1 // loop_body
      %s19 = ssub.s32 %s14, 1
      %s20 = ssub.s32 %s14, 2
      %s21 = sadd.s32 %s14, 1
      %s22 = ssub.s32 %s14, %s21
      %p23 = scmp.eq.s32.totalorder %s22, 0
      %s25 = sadd.s32 %s24, 1
      %s26 = scalar_select %p23, %s24, %s25
      %p29 = pneg %p23
      %p30 = scmp.eq.s32.totalorder %s14, 1
      %p31 = por %p29, %p30
      %p32 = scmp.ne.s32.totalorder %s24, %s27
      %p33 = scmp.eq.s32.totalorder %s14, 0
      %p34 = por %p32, %p33
      %p35 = scmp.ne.s32.totalorder %s24, %s27
      %p36 = scmp.eq.s32.totalorder %s19, 1
      %p37 = por %p35, %p36
      %p38 = scmp.ne.s32.totalorder %s27, %s28
      %p39 = scmp.eq.s32.totalorder %s19, 0
      %p40 = por %p38, %p39
      %p41 = scmp.ne.s32.totalorder %s27, %s28
      %p42 = scmp.eq.s32.totalorder %s20, 1
      %p43 = por %p41, %p42
      %p45 = scmp.ne.s32.totalorder %s28, %s44
      %p46 = scmp.eq.s32.totalorder %s20, 0
      %p47 = por %p45, %p46
      %s49 = sadd.s32 %s48, 1
      %p52 = scmp.eq.s32.totalorder %s14, 1
      %p53 = scmp.ne.s32.totalorder %s48, %s50
      %p54 = scmp.eq.s32.totalorder %s14, 0
      %p55 = por %p53, %p54
      %p56 = scmp.ne.s32.totalorder %s48, %s50
      %p57 = scmp.eq.s32.totalorder %s19, 1
      %p58 = por %p56, %p57
      %p59 = scmp.ne.s32.totalorder %s50, %s51
      %p60 = scmp.eq.s32.totalorder %s19, 0
      %p61 = por %p59, %p60
      %p62 = scmp.ne.s32.totalorder %s50, %s51
      %p63 = scmp.eq.s32.totalorder %s20, 1
      %p64 = por %p62, %p63
      %p66 = scmp.ne.s32.totalorder %s51, %s65
      %p67 = scmp.eq.s32.totalorder %s20, 0
      %p68 = por %p66, %p67
      %s70 = sadd.s32 %s69, 1
      %p73 = scmp.eq.s32.totalorder %s14, 1
      %p74 = scmp.ne.s32.totalorder %s69, %s71
      %p75 = scmp.eq.s32.totalorder %s14, 0
      %p76 = por %p74, %p75
      %p77 = scmp.ne.s32.totalorder %s69, %s71
      %p78 = scmp.eq.s32.totalorder %s19, 1
      %p79 = por %p77, %p78
      %p80 = scmp.ne.s32.totalorder %s71, %s72
      %p81 = scmp.eq.s32.totalorder %s19, 0
      %p82 = por %p80, %p81
      %p83 = scmp.ne.s32.totalorder %s71, %s72
      %p84 = scmp.eq.s32.totalorder %s20, 1
      %p85 = por %p83, %p84
      %p87 = scmp.ne.s32.totalorder %s72, %s86
      %p88 = scmp.eq.s32.totalorder %s20, 0
      %p89 = por %p87, %p88
      %s90 = ssub.s32 %s14, %s21
      %p91 = scmp.eq.s32.totalorder %s90, 0
      %s93 = sadd.s32 %s92, 1
      %s94 = scalar_select %p91, %s92, %s93
      %p97 = pneg %p91
      %p98 = scmp.eq.s32.totalorder %s14, 1
      %p99 = por %p97, %p98
      %p100 = scmp.ne.s32.totalorder %s92, %s95
      %p101 = scmp.eq.s32.totalorder %s14, 0
      %p102 = por %p100, %p101
      %p103 = scmp.ne.s32.totalorder %s92, %s95
      %p104 = scmp.eq.s32.totalorder %s19, 1
      %p105 = por %p103, %p104
      %p106 = scmp.ne.s32.totalorder %s95, %s96
      %p107 = scmp.eq.s32.totalorder %s19, 0
      %p108 = por %p106, %p107
      %p109 = scmp.ne.s32.totalorder %s95, %s96
      %p110 = scmp.eq.s32.totalorder %s20, 1
      %p111 = por %p109, %p110
      %p113 = scmp.ne.s32.totalorder %s96, %s112
      %p114 = scmp.eq.s32.totalorder %s20, 0
      %p115 = por %p113, %p114
      %p116 = scmp.le.s32.totalorder 1, %s14
      %p117 = scmp.lt.s32.totalorder %s14, 3
      %p118 = pnand %p116, %p117
      %p119 = pneg %p118
      // Predicated region
      $region9: #{tpu_custom_call.1} parent=5 // pred_check
        _
      $region10: #{tpu_custom_call.1} parent=5 // pred_check_branch
        %121 = sbr.rel (%p118) target = $region12
      $region11: #{tpu_custom_call.1} parent=5 // pred_region
        %s122 = ssub.s32 %s14, 1
        // Predicated region
        $region13: #{tpu_custom_call.1} parent=11 // pred_check
          %p123 = pneg %p61
        $region14: #{tpu_custom_call.1} parent=11 // pred_check_branch
          %125 = sbr.rel (%p123) target = $region16
        $region15: #{tpu_custom_call.1} parent=11 // pred_region
          %s127 = ssub.s32 4608, 4608
          %128 = vsyncadd [#allocation6], %s127
          %s129 = sshll.u32 [#allocation5], 4
          %s130 = int_to_ptr.vmem [resolvable:$true] %s129
          %135 = dma.hbm_to_vmem [thread:$0]  %s1, 4608, %s130, [#allocation6], 384, 384, 24
        $region16: #{tpu_custom_call.1} parent=11 // pred_fallthru
          _
        // Predicated region
        $region17: #{tpu_custom_call.1} parent=11 // pred_check
          %p136 = pneg %p82
        $region18: #{tpu_custom_call.1} parent=11 // pred_check_branch
          %138 = sbr.rel (%p136) target = $region20
        $region19: #{tpu_custom_call.1} parent=11 // pred_region
          _
        $region20: #{tpu_custom_call.1} parent=11 // pred_fallthru
          _
      $region12: #{tpu_custom_call.1} parent=5 // pred_fallthru
        _
      %p139 = scmp.lt.s32.totalorder %s14, 2
      // Predicated region
      $region21: #{tpu_custom_call.1} parent=5 // pred_check
        %p140 = pneg %p139
      $region22: #{tpu_custom_call.1} parent=5 // pred_check_branch
        %142 = sbr.rel (%p140) target = $region24
      $region23: #{tpu_custom_call.1} parent=5 // pred_region
        // Predicated region
        $region25: #{tpu_custom_call.1} parent=23 // pred_check
          %p143 = pneg %p34
        $region26: #{tpu_custom_call.1} parent=23 // pred_check_branch
          %145 = sbr.rel (%p143) target = $region28
        $region27: #{tpu_custom_call.1} parent=23 // pred_region
          %s146 = sand.u32 %s24, 1
          %s147 = scalar_lea.sflag [#allocation4], %s146
          %s148 = sand.u32 %s24, 1
          %s149 = smul.addr %s148, 2304
          %s150 = scalar_lea.vmem [#allocation3], %s149
          %s151 = smul.u32 8, %s14
          %s153 = ssub.s32 36864, 36864
          %154 = vsyncadd %s147, %s153
          %s155 = smul.addr %s151, 36
          %s156 = smul.addr %s155, 128
          %s157 = scalar_lea.hbm %s0, %s156
          %s158 = sshll.u32 %s150, 4
          %s159 = int_to_ptr.vmem [resolvable:$true] %s158
          %164 = dma.hbm_to_vmem [thread:$0]  %s157, 36864, %s159, %s147, 384, 384, 24
        $region28: #{tpu_custom_call.1} parent=23 // pred_fallthru
          _
      $region24: #{tpu_custom_call.1} parent=5 // pred_fallthru
        _
      %p165 = scmp.le.s32.totalorder 1, %s14
      %p166 = scmp.lt.s32.totalorder %s14, 3
      %p167 = pnand %p165, %p166
      %p168 = pneg %p167
      // Predicated region
      $region29: #{tpu_custom_call.1} parent=5 // pred_check
        _
      $region30: #{tpu_custom_call.1} parent=5 // pred_check_branch
        %170 = sbr.rel (%p167) target = $region32
      $region31: #{tpu_custom_call.1} parent=5 // pred_region
        %s171 = ssub.s32 %s14, 1
        %s172 = sand.u32 %s27, 1
        %s173 = scalar_lea.sflag [#allocation4], %s172
        %s174 = sand.u32 %s27, 1
        %s175 = smul.addr %s174, 2304
        %s176 = scalar_lea.vmem [#allocation3], %s175
        // Predicated region
        $region33: #{tpu_custom_call.1} parent=31 // pred_check
          %p177 = pneg %p40
        $region34: #{tpu_custom_call.1} parent=31 // pred_check_branch
          %179 = sbr.rel (%p177) target = $region36
        $region35: #{tpu_custom_call.1} parent=31 // pred_region
          %180 = dma.done %s173, 36864
        $region36: #{tpu_custom_call.1} parent=31 // pred_fallthru
          _
        // Predicated region
        $region37: #{tpu_custom_call.1} parent=31 // pred_check
          %p181 = pneg %p61
        $region38: #{tpu_custom_call.1} parent=31 // pred_check_branch
          %183 = sbr.rel (%p181) target = $region40
        $region39: #{tpu_custom_call.1} parent=31 // pred_region
          %184 = dma.done [#allocation6], 4608
        $region40: #{tpu_custom_call.1} parent=31 // pred_fallthru
          _
        %s185 = sand.u32 %s27, 1
        %s186 = scalar_lea.sflag [#allocation4], %s185
        %s187 = sand.u32 %s27, 1
        %s188 = smul.addr %s187, 2304
        %s189 = scalar_lea.vmem [#allocation3], %s188
        %p190 = pneg %p40
        %p191 = pneg %p37
        %p192 = pneg %p61
        %p193 = pneg %p58
        %p194 = pneg %p82
        %p195 = pneg %p79
        %p196 = pneg %p108
        %p197 = pneg %p105
        %p198 = scmp.lt.s32.totalorder %s19, 1
        %s199 = scalar_select %p198, %s19, 1
        %s200 = smul.addr %s199, 8
        %s201 = scalar_lea.vmem %s3, %s200
        %s202 = smul.u32 8, %s19
        %p203 = scmp.lt.s32.totalorder %s19, 1
        %s204 = scalar_select %p203, %s19, 1
        %s205 = smul.addr %s204, 8
        %s206 = scalar_lea.vmem %s3, %s205
        %v207 = vld [vmem:[%s176] sm:$0xff]
        %v208 = vld [vmem:[%s176 + $0x8] sm:$0xff]
        %v209 = vld [vmem:[%s176 + $0x10] sm:$0xff]
        %v210 = vld [vmem:[%s176 + $0x18] sm:$0xff]
        %v211 = vld [vmem:[%s176 + $0x20] sm:$0xff]
        %v212 = vld [vmem:[%s176 + $0x28] sm:$0xff]
        %v213 = vld [vmem:[%s176 + $0x30] sm:$0xff]
        %v214 = vld [vmem:[%s176 + $0x38] sm:$0xff]
        %v215 = vld [vmem:[%s176 + $0x40] sm:$0xff]
        %v216 = vld [vmem:[%s176 + $0x48] sm:$0xff]
        %v217 = vld [vmem:[%s176 + $0x50] sm:$0xff]
        %v218 = vld [vmem:[%s176 + $0x58] sm:$0xff]
        %v219 = vld [vmem:[%s176 + $0x60] sm:$0xff]
        %v220 = vld [vmem:[%s176 + $0x68] sm:$0xff]
        %v221 = vld [vmem:[%s176 + $0x70] sm:$0xff]
        %v222 = vld [vmem:[%s176 + $0x78] sm:$0xff]
        %v223 = vld [vmem:[%s176 + $0x80] sm:$0xff]
        %v224 = vld [vmem:[%s176 + $0x88] sm:$0xff]
        %v225 = vld [vmem:[%s176 + $0x90] sm:$0xff]
        %v226 = vld [vmem:[%s176 + $0x98] sm:$0xff]
        %v227 = vld [vmem:[%s176 + $0xa0] sm:$0xff]
        %v228 = vld [vmem:[%s176 + $0xa8] sm:$0xff]
        %v229 = vld [vmem:[%s176 + $0xb0] sm:$0xff]
        %v230 = vld [vmem:[%s176 + $0xb8] sm:$0xff]
        %v231 = vld [vmem:[%s176 + $0xc0] sm:$0xff]
        %v232 = vld [vmem:[%s176 + $0xc8] sm:$0xff]
        %v233 = vld [vmem:[%s176 + $0xd0] sm:$0xff]
        %v234 = vld [vmem:[%s176 + $0xd8] sm:$0xff]
        %v235 = vld [vmem:[%s176 + $0xe0] sm:$0xff]
        %v236 = vld [vmem:[%s176 + $0xe8] sm:$0xff]
        %v237 = vld [vmem:[%s176 + $0xf0] sm:$0xff]
        %v238 = vld [vmem:[%s176 + $0xf8] sm:$0xff]
        %v239 = vld [vmem:[%s176 + $0x100] sm:$0xff]
        %v240 = vld [vmem:[%s176 + $0x108] sm:$0xff]
        %v241 = vld [vmem:[%s176 + $0x110] sm:$0xff]
        %v242 = vld [vmem:[%s176 + $0x118] sm:$0xff]
        %v243 = vld [vmem:[%s176 + $0x120] sm:$0xff]
        %v244 = vld [vmem:[%s176 + $0x128] sm:$0xff]
        %v245 = vld [vmem:[%s176 + $0x130] sm:$0xff]
        %v246 = vld [vmem:[%s176 + $0x138] sm:$0xff]
        %v247 = vld [vmem:[%s176 + $0x140] sm:$0xff]
        %v248 = vld [vmem:[%s176 + $0x148] sm:$0xff]
        %v249 = vld [vmem:[%s176 + $0x150] sm:$0xff]
        %v250 = vld [vmem:[%s176 + $0x158] sm:$0xff]
        %v251 = vld [vmem:[%s176 + $0x160] sm:$0xff]
        %v252 = vld [vmem:[%s176 + $0x168] sm:$0xff]
        %v253 = vld [vmem:[%s176 + $0x170] sm:$0xff]
        %v254 = vld [vmem:[%s176 + $0x178] sm:$0xff]
        %v255 = vld [vmem:[%s176 + $0x180] sm:$0xff]
        %v256 = vld [vmem:[%s176 + $0x188] sm:$0xff]
        %v257 = vld [vmem:[%s176 + $0x190] sm:$0xff]
        %v258 = vld [vmem:[%s176 + $0x198] sm:$0xff]
        %v259 = vld [vmem:[%s176 + $0x1a0] sm:$0xff]
        %v260 = vld [vmem:[%s176 + $0x1a8] sm:$0xff]
        %v261 = vld [vmem:[%s176 + $0x1b0] sm:$0xff]
        %v262 = vld [vmem:[%s176 + $0x1b8] sm:$0xff]
        %v263 = vld [vmem:[%s176 + $0x1c0] sm:$0xff]
        %v264 = vld [vmem:[%s176 + $0x1c8] sm:$0xff]
        %v265 = vld [vmem:[%s176 + $0x1d0] sm:$0xff]
        %v266 = vld [vmem:[%s176 + $0x1d8] sm:$0xff]
        %v267 = vld [vmem:[%s176 + $0x1e0] sm:$0xff]
        %v268 = vld [vmem:[%s176 + $0x1e8] sm:$0xff]
        %v269 = vld [vmem:[%s176 + $0x1f0] sm:$0xff]
        %v270 = vld [vmem:[%s176 + $0x1f8] sm:$0xff]
        %v271 = vld [vmem:[%s176 + $0x200] sm:$0xff]
        %v272 = vld [vmem:[%s176 + $0x208] sm:$0xff]
        %v273 = vld [vmem:[%s176 + $0x210] sm:$0xff]
        %v274 = vld [vmem:[%s176 + $0x218] sm:$0xff]
        %v275 = vld [vmem:[%s176 + $0x220] sm:$0xff]
        %v276 = vld [vmem:[%s176 + $0x228] sm:$0xff]
        %v277 = vld [vmem:[%s176 + $0x230] sm:$0xff]
        %v278 = vld [vmem:[%s176 + $0x238] sm:$0xff]
        %v279 = vld [vmem:[%s176 + $0x240] sm:$0xff]
        %v280 = vld [vmem:[%s176 + $0x248] sm:$0xff]
        %v281 = vld [vmem:[%s176 + $0x250] sm:$0xff]
        %v282 = vld [vmem:[%s176 + $0x258] sm:$0xff]
        %v283 = vld [vmem:[%s176 + $0x260] sm:$0xff]
        %v284 = vld [vmem:[%s176 + $0x268] sm:$0xff]
        %v285 = vld [vmem:[%s176 + $0x270] sm:$0xff]
        %v286 = vld [vmem:[%s176 + $0x278] sm:$0xff]
        %v287 = vld [vmem:[%s176 + $0x280] sm:$0xff]
        %v288 = vld [vmem:[%s176 + $0x288] sm:$0xff]
        %v289 = vld [vmem:[%s176 + $0x290] sm:$0xff]
        %v290 = vld [vmem:[%s176 + $0x298] sm:$0xff]
        %v291 = vld [vmem:[%s176 + $0x2a0] sm:$0xff]
        %v292 = vld [vmem:[%s176 + $0x2a8] sm:$0xff]
        %v293 = vld [vmem:[%s176 + $0x2b0] sm:$0xff]
        %v294 = vld [vmem:[%s176 + $0x2b8] sm:$0xff]
        %v295 = vld [vmem:[%s176 + $0x2c0] sm:$0xff]
        %v296 = vld [vmem:[%s176 + $0x2c8] sm:$0xff]
        %v297 = vld [vmem:[%s176 + $0x2d0] sm:$0xff]
        %v298 = vld [vmem:[%s176 + $0x2d8] sm:$0xff]
        %v299 = vld [vmem:[%s176 + $0x2e0] sm:$0xff]
        %v300 = vld [vmem:[%s176 + $0x2e8] sm:$0xff]
        %v301 = vld [vmem:[%s176 + $0x2f0] sm:$0xff]
        %v302 = vld [vmem:[%s176 + $0x2f8] sm:$0xff]
        %v303 = vld [vmem:[%s176 + $0x300] sm:$0xff]
        %v304 = vld [vmem:[%s176 + $0x308] sm:$0xff]
        %v305 = vld [vmem:[%s176 + $0x310] sm:$0xff]
        %v306 = vld [vmem:[%s176 + $0x318] sm:$0xff]
        %v307 = vld [vmem:[%s176 + $0x320] sm:$0xff]
        %v308 = vld [vmem:[%s176 + $0x328] sm:$0xff]
        %v309 = vld [vmem:[%s176 + $0x330] sm:$0xff]
        %v310 = vld [vmem:[%s176 + $0x338] sm:$0xff]
        %v311 = vld [vmem:[%s176 + $0x340] sm:$0xff]
        %v312 = vld [vmem:[%s176 + $0x348] sm:$0xff]
        %v313 = vld [vmem:[%s176 + $0x350] sm:$0xff]
        %v314 = vld [vmem:[%s176 + $0x358] sm:$0xff]
        %v315 = vld [vmem:[%s176 + $0x360] sm:$0xff]
        %v316 = vld [vmem:[%s176 + $0x368] sm:$0xff]
        %v317 = vld [vmem:[%s176 + $0x370] sm:$0xff]
        %v318 = vld [vmem:[%s176 + $0x378] sm:$0xff]
        %v319 = vld [vmem:[%s176 + $0x380] sm:$0xff]
        %v320 = vld [vmem:[%s176 + $0x388] sm:$0xff]
        %v321 = vld [vmem:[%s176 + $0x390] sm:$0xff]
        %v322 = vld [vmem:[%s176 + $0x398] sm:$0xff]
        %v323 = vld [vmem:[%s176 + $0x3a0] sm:$0xff]
        %v324 = vld [vmem:[%s176 + $0x3a8] sm:$0xff]
        %v325 = vld [vmem:[%s176 + $0x3b0] sm:$0xff]
        %v326 = vld [vmem:[%s176 + $0x3b8] sm:$0xff]
        %v327 = vld [vmem:[%s176 + $0x3c0] sm:$0xff]
        %v328 = vld [vmem:[%s176 + $0x3c8] sm:$0xff]
        %v329 = vld [vmem:[%s176 + $0x3d0] sm:$0xff]
        %v330 = vld [vmem:[%s176 + $0x3d8] sm:$0xff]
        %v331 = vld [vmem:[%s176 + $0x3e0] sm:$0xff]
        %v332 = vld [vmem:[%s176 + $0x3e8] sm:$0xff]
        %v333 = vld [vmem:[%s176 + $0x3f0] sm:$0xff]
        %v334 = vld [vmem:[%s176 + $0x3f8] sm:$0xff]
        %v335 = vld [vmem:[%s176 + $0x400] sm:$0xff]
        %v336 = vld [vmem:[%s176 + $0x408] sm:$0xff]
        %v337 = vld [vmem:[%s176 + $0x410] sm:$0xff]
        %v338 = vld [vmem:[%s176 + $0x418] sm:$0xff]
        %v339 = vld [vmem:[%s176 + $0x420] sm:$0xff]
        %v340 = vld [vmem:[%s176 + $0x428] sm:$0xff]
        %v341 = vld [vmem:[%s176 + $0x430] sm:$0xff]
        %v342 = vld [vmem:[%s176 + $0x438] sm:$0xff]
        %v343 = vld [vmem:[%s176 + $0x440] sm:$0xff]
        %v344 = vld [vmem:[%s176 + $0x448] sm:$0xff]
        %v345 = vld [vmem:[%s176 + $0x450] sm:$0xff]
        %v346 = vld [vmem:[%s176 + $0x458] sm:$0xff]
        %v347 = vld [vmem:[%s176 + $0x460] sm:$0xff]
        %v348 = vld [vmem:[%s176 + $0x468] sm:$0xff]
        %v349 = vld [vmem:[%s176 + $0x470] sm:$0xff]
        %v350 = vld [vmem:[%s176 + $0x478] sm:$0xff]
        %v351 = vld [vmem:[%s176 + $0x480] sm:$0xff]
        %v352 = vld [vmem:[%s176 + $0x488] sm:$0xff]
        %v353 = vld [vmem:[%s176 + $0x490] sm:$0xff]
        %v354 = vld [vmem:[%s176 + $0x498] sm:$0xff]
        %v355 = vld [vmem:[%s176 + $0x4a0] sm:$0xff]
        %v356 = vld [vmem:[%s176 + $0x4a8] sm:$0xff]
        %v357 = vld [vmem:[%s176 + $0x4b0] sm:$0xff]
        %v358 = vld [vmem:[%s176 + $0x4b8] sm:$0xff]
        %v359 = vld [vmem:[%s176 + $0x4c0] sm:$0xff]
        %v360 = vld [vmem:[%s176 + $0x4c8] sm:$0xff]
        %v361 = vld [vmem:[%s176 + $0x4d0] sm:$0xff]
        %v362 = vld [vmem:[%s176 + $0x4d8] sm:$0xff]
        %v363 = vld [vmem:[%s176 + $0x4e0] sm:$0xff]
        %v364 = vld [vmem:[%s176 + $0x4e8] sm:$0xff]
        %v365 = vld [vmem:[%s176 + $0x4f0] sm:$0xff]
        %v366 = vld [vmem:[%s176 + $0x4f8] sm:$0xff]
        %v367 = vld [vmem:[%s176 + $0x500] sm:$0xff]
        %v368 = vld [vmem:[%s176 + $0x508] sm:$0xff]
        %v369 = vld [vmem:[%s176 + $0x510] sm:$0xff]
        %v370 = vld [vmem:[%s176 + $0x518] sm:$0xff]
        %v371 = vld [vmem:[%s176 + $0x520] sm:$0xff]
        %v372 = vld [vmem:[%s176 + $0x528] sm:$0xff]
        %v373 = vld [vmem:[%s176 + $0x530] sm:$0xff]
        %v374 = vld [vmem:[%s176 + $0x538] sm:$0xff]
        %v375 = vld [vmem:[%s176 + $0x540] sm:$0xff]
        %v376 = vld [vmem:[%s176 + $0x548] sm:$0xff]
        %v377 = vld [vmem:[%s176 + $0x550] sm:$0xff]
        %v378 = vld [vmem:[%s176 + $0x558] sm:$0xff]
        %v379 = vld [vmem:[%s176 + $0x560] sm:$0xff]
        %v380 = vld [vmem:[%s176 + $0x568] sm:$0xff]
        %v381 = vld [vmem:[%s176 + $0x570] sm:$0xff]
        %v382 = vld [vmem:[%s176 + $0x578] sm:$0xff]
        %v383 = vld [vmem:[%s176 + $0x580] sm:$0xff]
        %v384 = vld [vmem:[%s176 + $0x588] sm:$0xff]
        %v385 = vld [vmem:[%s176 + $0x590] sm:$0xff]
        %v386 = vld [vmem:[%s176 + $0x598] sm:$0xff]
        %v387 = vld [vmem:[%s176 + $0x5a0] sm:$0xff]
        %v388 = vld [vmem:[%s176 + $0x5a8] sm:$0xff]
        %v389 = vld [vmem:[%s176 + $0x5b0] sm:$0xff]
        %v390 = vld [vmem:[%s176 + $0x5b8] sm:$0xff]
        %v391 = vld [vmem:[%s176 + $0x5c0] sm:$0xff]
        %v392 = vld [vmem:[%s176 + $0x5c8] sm:$0xff]
        %v393 = vld [vmem:[%s176 + $0x5d0] sm:$0xff]
        %v394 = vld [vmem:[%s176 + $0x5d8] sm:$0xff]
        %v395 = vld [vmem:[%s176 + $0x5e0] sm:$0xff]
        %v396 = vld [vmem:[%s176 + $0x5e8] sm:$0xff]
        %v397 = vld [vmem:[%s176 + $0x5f0] sm:$0xff]
        %v398 = vld [vmem:[%s176 + $0x5f8] sm:$0xff]
        %v399 = vld [vmem:[%s176 + $0x600] sm:$0xff]
        %v400 = vld [vmem:[%s176 + $0x608] sm:$0xff]
        %v401 = vld [vmem:[%s176 + $0x610] sm:$0xff]
        %v402 = vld [vmem:[%s176 + $0x618] sm:$0xff]
        %v403 = vld [vmem:[%s176 + $0x620] sm:$0xff]
        %v404 = vld [vmem:[%s176 + $0x628] sm:$0xff]
        %v405 = vld [vmem:[%s176 + $0x630] sm:$0xff]
        %v406 = vld [vmem:[%s176 + $0x638] sm:$0xff]
        %v407 = vld [vmem:[%s176 + $0x640] sm:$0xff]
        %v408 = vld [vmem:[%s176 + $0x648] sm:$0xff]
        %v409 = vld [vmem:[%s176 + $0x650] sm:$0xff]
        %v410 = vld [vmem:[%s176 + $0x658] sm:$0xff]
        %v411 = vld [vmem:[%s176 + $0x660] sm:$0xff]
        %v412 = vld [vmem:[%s176 + $0x668] sm:$0xff]
        %v413 = vld [vmem:[%s176 + $0x670] sm:$0xff]
        %v414 = vld [vmem:[%s176 + $0x678] sm:$0xff]
        %v415 = vld [vmem:[%s176 + $0x680] sm:$0xff]
        %v416 = vld [vmem:[%s176 + $0x688] sm:$0xff]
        %v417 = vld [vmem:[%s176 + $0x690] sm:$0xff]
        %v418 = vld [vmem:[%s176 + $0x698] sm:$0xff]
        %v419 = vld [vmem:[%s176 + $0x6a0] sm:$0xff]
        %v420 = vld [vmem:[%s176 + $0x6a8] sm:$0xff]
        %v421 = vld [vmem:[%s176 + $0x6b0] sm:$0xff]
        %v422 = vld [vmem:[%s176 + $0x6b8] sm:$0xff]
        %v423 = vld [vmem:[%s176 + $0x6c0] sm:$0xff]
        %v424 = vld [vmem:[%s176 + $0x6c8] sm:$0xff]
        %v425 = vld [vmem:[%s176 + $0x6d0] sm:$0xff]
        %v426 = vld [vmem:[%s176 + $0x6d8] sm:$0xff]
        %v427 = vld [vmem:[%s176 + $0x6e0] sm:$0xff]
        %v428 = vld [vmem:[%s176 + $0x6e8] sm:$0xff]
        %v429 = vld [vmem:[%s176 + $0x6f0] sm:$0xff]
        %v430 = vld [vmem:[%s176 + $0x6f8] sm:$0xff]
        %v431 = vld [vmem:[%s176 + $0x700] sm:$0xff]
        %v432 = vld [vmem:[%s176 + $0x708] sm:$0xff]
        %v433 = vld [vmem:[%s176 + $0x710] sm:$0xff]
        %v434 = vld [vmem:[%s176 + $0x718] sm:$0xff]
        %v435 = vld [vmem:[%s176 + $0x720] sm:$0xff]
        %v436 = vld [vmem:[%s176 + $0x728] sm:$0xff]
        %v437 = vld [vmem:[%s176 + $0x730] sm:$0xff]
        %v438 = vld [vmem:[%s176 + $0x738] sm:$0xff]
        %v439 = vld [vmem:[%s176 + $0x740] sm:$0xff]
        %v440 = vld [vmem:[%s176 + $0x748] sm:$0xff]
        %v441 = vld [vmem:[%s176 + $0x750] sm:$0xff]
        %v442 = vld [vmem:[%s176 + $0x758] sm:$0xff]
        %v443 = vld [vmem:[%s176 + $0x760] sm:$0xff]
        %v444 = vld [vmem:[%s176 + $0x768] sm:$0xff]
        %v445 = vld [vmem:[%s176 + $0x770] sm:$0xff]
        %v446 = vld [vmem:[%s176 + $0x778] sm:$0xff]
        %v447 = vld [vmem:[%s176 + $0x780] sm:$0xff]
        %v448 = vld [vmem:[%s176 + $0x788] sm:$0xff]
        %v449 = vld [vmem:[%s176 + $0x790] sm:$0xff]
        %v450 = vld [vmem:[%s176 + $0x798] sm:$0xff]
        %v451 = vld [vmem:[%s176 + $0x7a0] sm:$0xff]
        %v452 = vld [vmem:[%s176 + $0x7a8] sm:$0xff]
        %v453 = vld [vmem:[%s176 + $0x7b0] sm:$0xff]
        %v454 = vld [vmem:[%s176 + $0x7b8] sm:$0xff]
        %v455 = vld [vmem:[%s176 + $0x7c0] sm:$0xff]
        %v456 = vld [vmem:[%s176 + $0x7c8] sm:$0xff]
        %v457 = vld [vmem:[%s176 + $0x7d0] sm:$0xff]
        %v458 = vld [vmem:[%s176 + $0x7d8] sm:$0xff]
        %v459 = vld [vmem:[%s176 + $0x7e0] sm:$0xff]
        %v460 = vld [vmem:[%s176 + $0x7e8] sm:$0xff]
        %v461 = vld [vmem:[%s176 + $0x7f0] sm:$0xff]
        %v462 = vld [vmem:[%s176 + $0x7f8] sm:$0xff]
        %v463 = vld [vmem:[%s176 + $0x800] sm:$0xff]
        %v464 = vld [vmem:[%s176 + $0x808] sm:$0xff]
        %v465 = vld [vmem:[%s176 + $0x810] sm:$0xff]
        %v466 = vld [vmem:[%s176 + $0x818] sm:$0xff]
        %v467 = vld [vmem:[%s176 + $0x820] sm:$0xff]
        %v468 = vld [vmem:[%s176 + $0x828] sm:$0xff]
        %v469 = vld [vmem:[%s176 + $0x830] sm:$0xff]
        %v470 = vld [vmem:[%s176 + $0x838] sm:$0xff]
        %v471 = vld [vmem:[%s176 + $0x840] sm:$0xff]
        %v472 = vld [vmem:[%s176 + $0x848] sm:$0xff]
        %v473 = vld [vmem:[%s176 + $0x850] sm:$0xff]
        %v474 = vld [vmem:[%s176 + $0x858] sm:$0xff]
        %v475 = vld [vmem:[%s176 + $0x860] sm:$0xff]
        %v476 = vld [vmem:[%s176 + $0x868] sm:$0xff]
        %v477 = vld [vmem:[%s176 + $0x870] sm:$0xff]
        %v478 = vld [vmem:[%s176 + $0x878] sm:$0xff]
        %v479 = vld [vmem:[%s176 + $0x880] sm:$0xff]
        %v480 = vld [vmem:[%s176 + $0x888] sm:$0xff]
        %v481 = vld [vmem:[%s176 + $0x890] sm:$0xff]
        %v482 = vld [vmem:[%s176 + $0x898] sm:$0xff]
        %v483 = vld [vmem:[%s176 + $0x8a0] sm:$0xff]
        %v484 = vld [vmem:[%s176 + $0x8a8] sm:$0xff]
        %v485 = vld [vmem:[%s176 + $0x8b0] sm:$0xff]
        %v486 = vld [vmem:[%s176 + $0x8b8] sm:$0xff]
        %v487 = vld [vmem:[%s176 + $0x8c0] sm:$0xff]
        %v488 = vld [vmem:[%s176 + $0x8c8] sm:$0xff]
        %v489 = vld [vmem:[%s176 + $0x8d0] sm:$0xff]
        %v490 = vld [vmem:[%s176 + $0x8d8] sm:$0xff]
        %v491 = vld [vmem:[%s176 + $0x8e0] sm:$0xff]
        %v492 = vld [vmem:[%s176 + $0x8e8] sm:$0xff]
        %v493 = vld [vmem:[%s176 + $0x8f0] sm:$0xff]
        %v494 = vld [vmem:[%s176 + $0x8f8] sm:$0xff]
        %v495 = vld [vmem:[#allocation5] sm:$0xff]
        %v496 = vld [vmem:[#allocation5 + $0x8] sm:$0xff]
        %v497 = vld [vmem:[#allocation5 + $0x10] sm:$0xff]
        %v498 = vld [vmem:[#allocation5 + $0x18] sm:$0xff]
        %v499 = vld [vmem:[#allocation5 + $0x20] sm:$0xff]
        %v500 = vld [vmem:[#allocation5 + $0x28] sm:$0xff]
        %v501 = vld [vmem:[#allocation5 + $0x30] sm:$0xff]
        %v502 = vld [vmem:[#allocation5 + $0x38] sm:$0xff]
        %v503 = vld [vmem:[#allocation5 + $0x40] sm:$0xff]
        %v504 = vld [vmem:[#allocation5 + $0x48] sm:$0xff]
        %v505 = vld [vmem:[#allocation5 + $0x50] sm:$0xff]
        %v506 = vld [vmem:[#allocation5 + $0x58] sm:$0xff]
        %v507 = vld [vmem:[#allocation5 + $0x60] sm:$0xff]
        %v508 = vld [vmem:[#allocation5 + $0x68] sm:$0xff]
        %v509 = vld [vmem:[#allocation5 + $0x70] sm:$0xff]
        %v510 = vld [vmem:[#allocation5 + $0x78] sm:$0xff]
        %v511 = vld [vmem:[#allocation5 + $0x80] sm:$0xff]
        %v512 = vld [vmem:[#allocation5 + $0x88] sm:$0xff]
        %v513 = vld [vmem:[#allocation5 + $0x90] sm:$0xff]
        %v514 = vld [vmem:[#allocation5 + $0x98] sm:$0xff]
        %v515 = vld [vmem:[#allocation5 + $0xa0] sm:$0xff]
        %v516 = vld [vmem:[#allocation5 + $0xa8] sm:$0xff]
        %v517 = vld [vmem:[#allocation5 + $0xb0] sm:$0xff]
        %v518 = vld [vmem:[#allocation5 + $0xb8] sm:$0xff]
        %v519 = vld [vmem:[#allocation5 + $0xc0] sm:$0xff]
        %v520 = vld [vmem:[#allocation5 + $0xc8] sm:$0xff]
        %v521 = vld [vmem:[#allocation5 + $0xd0] sm:$0xff]
        %v522 = vld [vmem:[#allocation5 + $0xd8] sm:$0xff]
        %v523 = vld [vmem:[#allocation5 + $0xe0] sm:$0xff]
        %v524 = vld [vmem:[#allocation5 + $0xe8] sm:$0xff]
        %v525 = vld [vmem:[#allocation5 + $0xf0] sm:$0xff]
        %v526 = vld [vmem:[#allocation5 + $0xf8] sm:$0xff]
        %v527 = vld [vmem:[#allocation5 + $0x100] sm:$0xff]
        %v528 = vld [vmem:[#allocation5 + $0x108] sm:$0xff]
        %v529 = vld [vmem:[#allocation5 + $0x110] sm:$0xff]
        %v530 = vld [vmem:[#allocation5 + $0x118] sm:$0xff]
        %v531 = vmul.f32 %v207, %v495
        %v532 = vmul.f32 %v208, %v496
        %v533 = vmul.f32 %v209, %v497
        %v534 = vmul.f32 %v210, %v498
        %v535 = vmul.f32 %v211, %v499
        %v536 = vmul.f32 %v212, %v500
        %v537 = vmul.f32 %v213, %v501
        %v538 = vmul.f32 %v214, %v502
        %v539 = vmul.f32 %v215, %v503
        %v540 = vmul.f32 %v216, %v504
        %v541 = vmul.f32 %v217, %v505
        %v542 = vmul.f32 %v218, %v506
        %v543 = vmul.f32 %v219, %v507
        %v544 = vmul.f32 %v220, %v508
        %v545 = vmul.f32 %v221, %v509
        %v546 = vmul.f32 %v222, %v510
        %v547 = vmul.f32 %v223, %v511
        %v548 = vmul.f32 %v224, %v512
        %v549 = vmul.f32 %v225, %v513
        %v550 = vmul.f32 %v226, %v514
        %v551 = vmul.f32 %v227, %v515
        %v552 = vmul.f32 %v228, %v516
        %v553 = vmul.f32 %v229, %v517
        %v554 = vmul.f32 %v230, %v518
        %v555 = vmul.f32 %v231, %v519
        %v556 = vmul.f32 %v232, %v520
        %v557 = vmul.f32 %v233, %v521
        %v558 = vmul.f32 %v234, %v522
        %v559 = vmul.f32 %v235, %v523
        %v560 = vmul.f32 %v236, %v524
        %v561 = vmul.f32 %v237, %v525
        %v562 = vmul.f32 %v238, %v526
        %v563 = vmul.f32 %v239, %v527
        %v564 = vmul.f32 %v240, %v528
        %v565 = vmul.f32 %v241, %v529
        %v566 = vmul.f32 %v242, %v530
        %v567 = vmul.f32 %v243, %v495
        %v568 = vmul.f32 %v244, %v496
        %v569 = vmul.f32 %v245, %v497
        %v570 = vmul.f32 %v246, %v498
        %v571 = vmul.f32 %v247, %v499
        %v572 = vmul.f32 %v248, %v500
        %v573 = vmul.f32 %v249, %v501
        %v574 = vmul.f32 %v250, %v502
        %v575 = vmul.f32 %v251, %v503
        %v576 = vmul.f32 %v252, %v504
        %v577 = vmul.f32 %v253, %v505
        %v578 = vmul.f32 %v254, %v506
        %v579 = vmul.f32 %v255, %v507
        %v580 = vmul.f32 %v256, %v508
        %v581 = vmul.f32 %v257, %v509
        %v582 = vmul.f32 %v258, %v510
        %v583 = vmul.f32 %v259, %v511
        %v584 = vmul.f32 %v260, %v512
        %v585 = vmul.f32 %v261, %v513
        %v586 = vmul.f32 %v262, %v514
        %v587 = vmul.f32 %v263, %v515
        %v588 = vmul.f32 %v264, %v516
        %v589 = vmul.f32 %v265, %v517
        %v590 = vmul.f32 %v266, %v518
        %v591 = vmul.f32 %v267, %v519
        %v592 = vmul.f32 %v268, %v520
        %v593 = vmul.f32 %v269, %v521
        %v594 = vmul.f32 %v270, %v522
        %v595 = vmul.f32 %v271, %v523
        %v596 = vmul.f32 %v272, %v524
        %v597 = vmul.f32 %v273, %v525
        %v598 = vmul.f32 %v274, %v526
        %v599 = vmul.f32 %v275, %v527
        %v600 = vmul.f32 %v276, %v528
        %v601 = vmul.f32 %v277, %v529
        %v602 = vmul.f32 %v278, %v530
        %v603 = vmul.f32 %v279, %v495
        %v604 = vmul.f32 %v280, %v496
        %v605 = vmul.f32 %v281, %v497
        %v606 = vmul.f32 %v282, %v498
        %v607 = vmul.f32 %v283, %v499
        %v608 = vmul.f32 %v284, %v500
        %v609 = vmul.f32 %v285, %v501
        %v610 = vmul.f32 %v286, %v502
        %v611 = vmul.f32 %v287, %v503
        %v612 = vmul.f32 %v288, %v504
        %v613 = vmul.f32 %v289, %v505
        %v614 = vmul.f32 %v290, %v506
        %v615 = vmul.f32 %v291, %v507
        %v616 = vmul.f32 %v292, %v508
        %v617 = vmul.f32 %v293, %v509
        %v618 = vmul.f32 %v294, %v510
        %v619 = vmul.f32 %v295, %v511
        %v620 = vmul.f32 %v296, %v512
        %v621 = vmul.f32 %v297, %v513
        %v622 = vmul.f32 %v298, %v514
        %v623 = vmul.f32 %v299, %v515
        %v624 = vmul.f32 %v300, %v516
        %v625 = vmul.f32 %v301, %v517
        %v626 = vmul.f32 %v302, %v518
        %v627 = vmul.f32 %v303, %v519
        %v628 = vmul.f32 %v304, %v520
        %v629 = vmul.f32 %v305, %v521
        %v630 = vmul.f32 %v306, %v522
        %v631 = vmul.f32 %v307, %v523
        %v632 = vmul.f32 %v308, %v524
        %v633 = vmul.f32 %v309, %v525
        %v634 = vmul.f32 %v310, %v526
        %v635 = vmul.f32 %v311, %v527
        %v636 = vmul.f32 %v312, %v528
        %v637 = vmul.f32 %v313, %v529
        %v638 = vmul.f32 %v314, %v530
        %v639 = vmul.f32 %v315, %v495
        %v640 = vmul.f32 %v316, %v496
        %v641 = vmul.f32 %v317, %v497
        %v642 = vmul.f32 %v318, %v498
        %v643 = vmul.f32 %v319, %v499
        %v644 = vmul.f32 %v320, %v500
        %v645 = vmul.f32 %v321, %v501
        %v646 = vmul.f32 %v322, %v502
        %v647 = vmul.f32 %v323, %v503
        %v648 = vmul.f32 %v324, %v504
        %v649 = vmul.f32 %v325, %v505
        %v650 = vmul.f32 %v326, %v506
        %v651 = vmul.f32 %v327, %v507
        %v652 = vmul.f32 %v328, %v508
        %v653 = vmul.f32 %v329, %v509
        %v654 = vmul.f32 %v330, %v510
        %v655 = vmul.f32 %v331, %v511
        %v656 = vmul.f32 %v332, %v512
        %v657 = vmul.f32 %v333, %v513
        %v658 = vmul.f32 %v334, %v514
        %v659 = vmul.f32 %v335, %v515
        %v660 = vmul.f32 %v336, %v516
        %v661 = vmul.f32 %v337, %v517
        %v662 = vmul.f32 %v338, %v518
        %v663 = vmul.f32 %v339, %v519
        %v664 = vmul.f32 %v340, %v520
        %v665 = vmul.f32 %v341, %v521
        %v666 = vmul.f32 %v342, %v522
        %v667 = vmul.f32 %v343, %v523
        %v668 = vmul.f32 %v344, %v524
        %v669 = vmul.f32 %v345, %v525
        %v670 = vmul.f32 %v346, %v526
        %v671 = vmul.f32 %v347, %v527
        %v672 = vmul.f32 %v348, %v528
        %v673 = vmul.f32 %v349, %v529
        %v674 = vmul.f32 %v350, %v530
        %v675 = vmul.f32 %v351, %v495
        %v676 = vmul.f32 %v352, %v496
        %v677 = vmul.f32 %v353, %v497
        %v678 = vmul.f32 %v354, %v498
        %v679 = vmul.f32 %v355, %v499
        %v680 = vmul.f32 %v356, %v500
        %v681 = vmul.f32 %v357, %v501
        %v682 = vmul.f32 %v358, %v502
        %v683 = vmul.f32 %v359, %v503
        %v684 = vmul.f32 %v360, %v504
        %v685 = vmul.f32 %v361, %v505
        %v686 = vmul.f32 %v362, %v506
        %v687 = vmul.f32 %v363, %v507
        %v688 = vmul.f32 %v364, %v508
        %v689 = vmul.f32 %v365, %v509
        %v690 = vmul.f32 %v366, %v510
        %v691 = vmul.f32 %v367, %v511
        %v692 = vmul.f32 %v368, %v512
        %v693 = vmul.f32 %v369, %v513
        %v694 = vmul.f32 %v370, %v514
        %v695 = vmul.f32 %v371, %v515
        %v696 = vmul.f32 %v372, %v516
        %v697 = vmul.f32 %v373, %v517
        %v698 = vmul.f32 %v374, %v518
        %v699 = vmul.f32 %v375, %v519
        %v700 = vmul.f32 %v376, %v520
        %v701 = vmul.f32 %v377, %v521
        %v702 = vmul.f32 %v378, %v522
        %v703 = vmul.f32 %v379, %v523
        %v704 = vmul.f32 %v380, %v524
        %v705 = vmul.f32 %v381, %v525
        %v706 = vmul.f32 %v382, %v526
        %v707 = vmul.f32 %v383, %v527
        %v708 = vmul.f32 %v384, %v528
        %v709 = vmul.f32 %v385, %v529
        %v710 = vmul.f32 %v386, %v530
        %v711 = vmul.f32 %v387, %v495
        %v712 = vmul.f32 %v388, %v496
        %v713 = vmul.f32 %v389, %v497
        %v714 = vmul.f32 %v390, %v498
        %v715 = vmul.f32 %v391, %v499
        %v716 = vmul.f32 %v392, %v500
        %v717 = vmul.f32 %v393, %v501
        %v718 = vmul.f32 %v394, %v502
        %v719 = vmul.f32 %v395, %v503
        %v720 = vmul.f32 %v396, %v504
        %v721 = vmul.f32 %v397, %v505
        %v722 = vmul.f32 %v398, %v506
        %v723 = vmul.f32 %v399, %v507
        %v724 = vmul.f32 %v400, %v508
        %v725 = vmul.f32 %v401, %v509
        %v726 = vmul.f32 %v402, %v510
        %v727 = vmul.f32 %v403, %v511
        %v728 = vmul.f32 %v404, %v512
        %v729 = vmul.f32 %v405, %v513
        %v730 = vmul.f32 %v406, %v514
        %v731 = vmul.f32 %v407, %v515
        %v732 = vmul.f32 %v408, %v516
        %v733 = vmul.f32 %v409, %v517
        %v734 = vmul.f32 %v410, %v518
        %v735 = vmul.f32 %v411, %v519
        %v736 = vmul.f32 %v412, %v520
        %v737 = vmul.f32 %v413, %v521
        %v738 = vmul.f32 %v414, %v522
        %v739 = vmul.f32 %v415, %v523
        %v740 = vmul.f32 %v416, %v524
        %v741 = vmul.f32 %v417, %v525
        %v742 = vmul.f32 %v418, %v526
        %v743 = vmul.f32 %v419, %v527
        %v744 = vmul.f32 %v420, %v528
        %v745 = vmul.f32 %v421, %v529
        %v746 = vmul.f32 %v422, %v530
        %v747 = vmul.f32 %v423, %v495
        %v748 = vmul.f32 %v424, %v496
        %v749 = vmul.f32 %v425, %v497
        %v750 = vmul.f32 %v426, %v498
        %v751 = vmul.f32 %v427, %v499
        %v752 = vmul.f32 %v428, %v500
        %v753 = vmul.f32 %v429, %v501
        %v754 = vmul.f32 %v430, %v502
        %v755 = vmul.f32 %v431, %v503
        %v756 = vmul.f32 %v432, %v504
        %v757 = vmul.f32 %v433, %v505
        %v758 = vmul.f32 %v434, %v506
        %v759 = vmul.f32 %v435, %v507
        %v760 = vmul.f32 %v436, %v508
        %v761 = vmul.f32 %v437, %v509
        %v762 = vmul.f32 %v438, %v510
        %v763 = vmul.f32 %v439, %v511
        %v764 = vmul.f32 %v440, %v512
        %v765 = vmul.f32 %v441, %v513
        %v766 = vmul.f32 %v442, %v514
        %v767 = vmul.f32 %v443, %v515
        %v768 = vmul.f32 %v444, %v516
        %v769 = vmul.f32 %v445, %v517
        %v770 = vmul.f32 %v446, %v518
        %v771 = vmul.f32 %v447, %v519
        %v772 = vmul.f32 %v448, %v520
        %v773 = vmul.f32 %v449, %v521
        %v774 = vmul.f32 %v450, %v522
        %v775 = vmul.f32 %v451, %v523
        %v776 = vmul.f32 %v452, %v524
        %v777 = vmul.f32 %v453, %v525
        %v778 = vmul.f32 %v454, %v526
        %v779 = vmul.f32 %v455, %v527
        %v780 = vmul.f32 %v456, %v528
        %v781 = vmul.f32 %v457, %v529
        %v782 = vmul.f32 %v458, %v530
        %v783 = vmul.f32 %v459, %v495
        %v784 = vmul.f32 %v460, %v496
        %v785 = vmul.f32 %v461, %v497
        %v786 = vmul.f32 %v462, %v498
        %v787 = vmul.f32 %v463, %v499
        %v788 = vmul.f32 %v464, %v500
        %v789 = vmul.f32 %v465, %v501
        %v790 = vmul.f32 %v466, %v502
        %v791 = vmul.f32 %v467, %v503
        %v792 = vmul.f32 %v468, %v504
        %v793 = vmul.f32 %v469, %v505
        %v794 = vmul.f32 %v470, %v506
        %v795 = vmul.f32 %v471, %v507
        %v796 = vmul.f32 %v472, %v508
        %v797 = vmul.f32 %v473, %v509
        %v798 = vmul.f32 %v474, %v510
        %v799 = vmul.f32 %v475, %v511
        %v800 = vmul.f32 %v476, %v512
        %v801 = vmul.f32 %v477, %v513
        %v802 = vmul.f32 %v478, %v514
        %v803 = vmul.f32 %v479, %v515
        %v804 = vmul.f32 %v480, %v516
        %v805 = vmul.f32 %v481, %v517
        %v806 = vmul.f32 %v482, %v518
        %v807 = vmul.f32 %v483, %v519
        %v808 = vmul.f32 %v484, %v520
        %v809 = vmul.f32 %v485, %v521
        %v810 = vmul.f32 %v486, %v522
        %v811 = vmul.f32 %v487, %v523
        %v812 = vmul.f32 %v488, %v524
        %v813 = vmul.f32 %v489, %v525
        %v814 = vmul.f32 %v490, %v526
        %v815 = vmul.f32 %v491, %v527
        %v816 = vmul.f32 %v492, %v528
        %v817 = vmul.f32 %v493, %v529
        %v818 = vmul.f32 %v494, %v530
        %v819 = vadd.f32 %v531, %v532
        %v820 = vadd.f32 %v819, %v533
        %821 = vadd.xlane.f32.xlu0 %v820
        %v822 = vpop.xlane.xlu0 %821
        %v823 = vadd.f32 %v534, %v535
        %v824 = vadd.f32 %v823, %v536
        %825 = vadd.xlane.f32.xlu0 %v824
        %v826 = vpop.xlane.xlu0 %825
        %v827 = vadd.f32 %v537, %v538
        %v828 = vadd.f32 %v827, %v539
        %829 = vadd.xlane.f32.xlu0 %v828
        %v830 = vpop.xlane.xlu0 %829
        %v831 = vadd.f32 %v540, %v541
        %v832 = vadd.f32 %v831, %v542
        %833 = vadd.xlane.f32.xlu0 %v832
        %v834 = vpop.xlane.xlu0 %833
        %v835 = vadd.f32 %v543, %v544
        %v836 = vadd.f32 %v835, %v545
        %837 = vadd.xlane.f32.xlu0 %v836
        %v838 = vpop.xlane.xlu0 %837
        %v839 = vadd.f32 %v546, %v547
        %v840 = vadd.f32 %v839, %v548
        %841 = vadd.xlane.f32.xlu0 %v840
        %v842 = vpop.xlane.xlu0 %841
        %v843 = vadd.f32 %v549, %v550
        %v844 = vadd.f32 %v843, %v551
        %845 = vadd.xlane.f32.xlu0 %v844
        %v846 = vpop.xlane.xlu0 %845
        %v847 = vadd.f32 %v552, %v553
        %v848 = vadd.f32 %v847, %v554
        %849 = vadd.xlane.f32.xlu0 %v848
        %v850 = vpop.xlane.xlu0 %849
        %v851 = vadd.f32 %v555, %v556
        %v852 = vadd.f32 %v851, %v557
        %853 = vadd.xlane.f32.xlu0 %v852
        %v854 = vpop.xlane.xlu0 %853
        %v855 = vadd.f32 %v558, %v559
        %v856 = vadd.f32 %v855, %v560
        %857 = vadd.xlane.f32.xlu0 %v856
        %v858 = vpop.xlane.xlu0 %857
        %v859 = vadd.f32 %v561, %v562
        %v860 = vadd.f32 %v859, %v563
        %861 = vadd.xlane.f32.xlu0 %v860
        %v862 = vpop.xlane.xlu0 %861
        %v863 = vadd.f32 %v564, %v565
        %v864 = vadd.f32 %v863, %v566
        %865 = vadd.xlane.f32.xlu0 %v864
        %v866 = vpop.xlane.xlu0 %865
        %v867 = vadd.f32 %v567, %v568
        %v868 = vadd.f32 %v867, %v569
        %869 = vadd.xlane.f32.xlu0 %v868
        %v870 = vpop.xlane.xlu0 %869
        %v871 = vadd.f32 %v570, %v571
        %v872 = vadd.f32 %v871, %v572
        %873 = vadd.xlane.f32.xlu0 %v872
        %v874 = vpop.xlane.xlu0 %873
        %v875 = vadd.f32 %v573, %v574
        %v876 = vadd.f32 %v875, %v575
        %877 = vadd.xlane.f32.xlu0 %v876
        %v878 = vpop.xlane.xlu0 %877
        %v879 = vadd.f32 %v576, %v577
        %v880 = vadd.f32 %v879, %v578
        %881 = vadd.xlane.f32.xlu0 %v880
        %v882 = vpop.xlane.xlu0 %881
        %v883 = vadd.f32 %v579, %v580
        %v884 = vadd.f32 %v883, %v581
        %885 = vadd.xlane.f32.xlu0 %v884
        %v886 = vpop.xlane.xlu0 %885
        %v887 = vadd.f32 %v582, %v583
        %v888 = vadd.f32 %v887, %v584
        %889 = vadd.xlane.f32.xlu0 %v888
        %v890 = vpop.xlane.xlu0 %889
        %v891 = vadd.f32 %v585, %v586
        %v892 = vadd.f32 %v891, %v587
        %893 = vadd.xlane.f32.xlu0 %v892
        %v894 = vpop.xlane.xlu0 %893
        %v895 = vadd.f32 %v588, %v589
        %v896 = vadd.f32 %v895, %v590
        %897 = vadd.xlane.f32.xlu0 %v896
        %v898 = vpop.xlane.xlu0 %897
        %v899 = vadd.f32 %v591, %v592
        %v900 = vadd.f32 %v899, %v593
        %901 = vadd.xlane.f32.xlu0 %v900
        %v902 = vpop.xlane.xlu0 %901
        %v903 = vadd.f32 %v594, %v595
        %v904 = vadd.f32 %v903, %v596
        %905 = vadd.xlane.f32.xlu0 %v904
        %v906 = vpop.xlane.xlu0 %905
        %v907 = vadd.f32 %v597, %v598
        %v908 = vadd.f32 %v907, %v599
        %909 = vadd.xlane.f32.xlu0 %v908
        %v910 = vpop.xlane.xlu0 %909
        %v911 = vadd.f32 %v600, %v601
        %v912 = vadd.f32 %v911, %v602
        %913 = vadd.xlane.f32.xlu0 %v912
        %v914 = vpop.xlane.xlu0 %913
        %v915 = vadd.f32 %v603, %v604
        %v916 = vadd.f32 %v915, %v605
        %917 = vadd.xlane.f32.xlu0 %v916
        %v918 = vpop.xlane.xlu0 %917
        %v919 = vadd.f32 %v606, %v607
        %v920 = vadd.f32 %v919, %v608
        %921 = vadd.xlane.f32.xlu0 %v920
        %v922 = vpop.xlane.xlu0 %921
        %v923 = vadd.f32 %v609, %v610
        %v924 = vadd.f32 %v923, %v611
        %925 = vadd.xlane.f32.xlu0 %v924
        %v926 = vpop.xlane.xlu0 %925
        %v927 = vadd.f32 %v612, %v613
        %v928 = vadd.f32 %v927, %v614
        %929 = vadd.xlane.f32.xlu0 %v928
        %v930 = vpop.xlane.xlu0 %929
        %v931 = vadd.f32 %v615, %v616
        %v932 = vadd.f32 %v931, %v617
        %933 = vadd.xlane.f32.xlu0 %v932
        %v934 = vpop.xlane.xlu0 %933
        %v935 = vadd.f32 %v618, %v619
        %v936 = vadd.f32 %v935, %v620
        %937 = vadd.xlane.f32.xlu0 %v936
        %v938 = vpop.xlane.xlu0 %937
        %v939 = vadd.f32 %v621, %v622
        %v940 = vadd.f32 %v939, %v623
        %941 = vadd.xlane.f32.xlu0 %v940
        %v942 = vpop.xlane.xlu0 %941
        %v943 = vadd.f32 %v624, %v625
        %v944 = vadd.f32 %v943, %v626
        %945 = vadd.xlane.f32.xlu0 %v944
        %v946 = vpop.xlane.xlu0 %945
        %v947 = vadd.f32 %v627, %v628
        %v948 = vadd.f32 %v947, %v629
        %949 = vadd.xlane.f32.xlu0 %v948
        %v950 = vpop.xlane.xlu0 %949
        %v951 = vadd.f32 %v630, %v631
        %v952 = vadd.f32 %v951, %v632
        %953 = vadd.xlane.f32.xlu0 %v952
        %v954 = vpop.xlane.xlu0 %953
        %v955 = vadd.f32 %v633, %v634
        %v956 = vadd.f32 %v955, %v635
        %957 = vadd.xlane.f32.xlu0 %v956
        %v958 = vpop.xlane.xlu0 %957
        %v959 = vadd.f32 %v636, %v637
        %v960 = vadd.f32 %v959, %v638
        %961 = vadd.xlane.f32.xlu0 %v960
        %v962 = vpop.xlane.xlu0 %961
        %v963 = vadd.f32 %v639, %v640
        %v964 = vadd.f32 %v963, %v641
        %965 = vadd.xlane.f32.xlu0 %v964
        %v966 = vpop.xlane.xlu0 %965
        %v967 = vadd.f32 %v642, %v643
        %v968 = vadd.f32 %v967, %v644
        %969 = vadd.xlane.f32.xlu0 %v968
        %v970 = vpop.xlane.xlu0 %969
        %v971 = vadd.f32 %v645, %v646
        %v972 = vadd.f32 %v971, %v647
        %973 = vadd.xlane.f32.xlu0 %v972
        %v974 = vpop.xlane.xlu0 %973
        %v975 = vadd.f32 %v648, %v649
        %v976 = vadd.f32 %v975, %v650
        %977 = vadd.xlane.f32.xlu0 %v976
        %v978 = vpop.xlane.xlu0 %977
        %v979 = vadd.f32 %v651, %v652
        %v980 = vadd.f32 %v979, %v653
        %981 = vadd.xlane.f32.xlu0 %v980
        %v982 = vpop.xlane.xlu0 %981
        %v983 = vadd.f32 %v654, %v655
        %v984 = vadd.f32 %v983, %v656
        %985 = vadd.xlane.f32.xlu0 %v984
        %v986 = vpop.xlane.xlu0 %985
        %v987 = vadd.f32 %v657, %v658
        %v988 = vadd.f32 %v987, %v659
        %989 = vadd.xlane.f32.xlu0 %v988
        %v990 = vpop.xlane.xlu0 %989
        %v991 = vadd.f32 %v660, %v661
        %v992 = vadd.f32 %v991, %v662
        %993 = vadd.xlane.f32.xlu0 %v992
        %v994 = vpop.xlane.xlu0 %993
        %v995 = vadd.f32 %v663, %v664
        %v996 = vadd.f32 %v995, %v665
        %997 = vadd.xlane.f32.xlu0 %v996
        %v998 = vpop.xlane.xlu0 %997
        %v999 = vadd.f32 %v666, %v667
        %v1000 = vadd.f32 %v999, %v668
        %1001 = vadd.xlane.f32.xlu0 %v1000
        %v1002 = vpop.xlane.xlu0 %1001
        %v1003 = vadd.f32 %v669, %v670
        %v1004 = vadd.f32 %v1003, %v671
        %1005 = vadd.xlane.f32.xlu0 %v1004
        %v1006 = vpop.xlane.xlu0 %1005
        %v1007 = vadd.f32 %v672, %v673
        %v1008 = vadd.f32 %v1007, %v674
        %1009 = vadd.xlane.f32.xlu0 %v1008
        %v1010 = vpop.xlane.xlu0 %1009
        %v1011 = vadd.f32 %v675, %v676
        %v1012 = vadd.f32 %v1011, %v677
        %1013 = vadd.xlane.f32.xlu0 %v1012
        %v1014 = vpop.xlane.xlu0 %1013
        %v1015 = vadd.f32 %v678, %v679
        %v1016 = vadd.f32 %v1015, %v680
        %1017 = vadd.xlane.f32.xlu0 %v1016
        %v1018 = vpop.xlane.xlu0 %1017
        %v1019 = vadd.f32 %v681, %v682
        %v1020 = vadd.f32 %v1019, %v683
        %1021 = vadd.xlane.f32.xlu0 %v1020
        %v1022 = vpop.xlane.xlu0 %1021
        %v1023 = vadd.f32 %v684, %v685
        %v1024 = vadd.f32 %v1023, %v686
        %1025 = vadd.xlane.f32.xlu0 %v1024
        %v1026 = vpop.xlane.xlu0 %1025
        %v1027 = vadd.f32 %v687, %v688
        %v1028 = vadd.f32 %v1027, %v689
        %1029 = vadd.xlane.f32.xlu0 %v1028
        %v1030 = vpop.xlane.xlu0 %1029
        %v1031 = vadd.f32 %v690, %v691
        %v1032 = vadd.f32 %v1031, %v692
        %1033 = vadd.xlane.f32.xlu0 %v1032
        %v1034 = vpop.xlane.xlu0 %1033
        %v1035 = vadd.f32 %v693, %v694
        %v1036 = vadd.f32 %v1035, %v695
        %1037 = vadd.xlane.f32.xlu0 %v1036
        %v1038 = vpop.xlane.xlu0 %1037
        %v1039 = vadd.f32 %v696, %v697
        %v1040 = vadd.f32 %v1039, %v698
        %1041 = vadd.xlane.f32.xlu0 %v1040
        %v1042 = vpop.xlane.xlu0 %1041
        %v1043 = vadd.f32 %v699, %v700
        %v1044 = vadd.f32 %v1043, %v701
        %1045 = vadd.xlane.f32.xlu0 %v1044
        %v1046 = vpop.xlane.xlu0 %1045
        %v1047 = vadd.f32 %v702, %v703
        %v1048 = vadd.f32 %v1047, %v704
        %1049 = vadd.xlane.f32.xlu0 %v1048
        %v1050 = vpop.xlane.xlu0 %1049
        %v1051 = vadd.f32 %v705, %v706
        %v1052 = vadd.f32 %v1051, %v707
        %1053 = vadd.xlane.f32.xlu0 %v1052
        %v1054 = vpop.xlane.xlu0 %1053
        %v1055 = vadd.f32 %v708, %v709
        %v1056 = vadd.f32 %v1055, %v710
        %1057 = vadd.xlane.f32.xlu0 %v1056
        %v1058 = vpop.xlane.xlu0 %1057
        %v1059 = vadd.f32 %v711, %v712
        %v1060 = vadd.f32 %v1059, %v713
        %1061 = vadd.xlane.f32.xlu0 %v1060
        %v1062 = vpop.xlane.xlu0 %1061
        %v1063 = vadd.f32 %v714, %v715
        %v1064 = vadd.f32 %v1063, %v716
        %1065 = vadd.xlane.f32.xlu0 %v1064
        %v1066 = vpop.xlane.xlu0 %1065
        %v1067 = vadd.f32 %v717, %v718
        %v1068 = vadd.f32 %v1067, %v719
        %1069 = vadd.xlane.f32.xlu0 %v1068
        %v1070 = vpop.xlane.xlu0 %1069
        %v1071 = vadd.f32 %v720, %v721
        %v1072 = vadd.f32 %v1071, %v722
        %1073 = vadd.xlane.f32.xlu0 %v1072
        %v1074 = vpop.xlane.xlu0 %1073
        %v1075 = vadd.f32 %v723, %v724
        %v1076 = vadd.f32 %v1075, %v725
        %1077 = vadd.xlane.f32.xlu0 %v1076
        %v1078 = vpop.xlane.xlu0 %1077
        %v1079 = vadd.f32 %v726, %v727
        %v1080 = vadd.f32 %v1079, %v728
        %1081 = vadd.xlane.f32.xlu0 %v1080
        %v1082 = vpop.xlane.xlu0 %1081
        %v1083 = vadd.f32 %v729, %v730
        %v1084 = vadd.f32 %v1083, %v731
        %1085 = vadd.xlane.f32.xlu0 %v1084
        %v1086 = vpop.xlane.xlu0 %1085
        %v1087 = vadd.f32 %v732, %v733
        %v1088 = vadd.f32 %v1087, %v734
        %1089 = vadd.xlane.f32.xlu0 %v1088
        %v1090 = vpop.xlane.xlu0 %1089
        %v1091 = vadd.f32 %v735, %v736
        %v1092 = vadd.f32 %v1091, %v737
        %1093 = vadd.xlane.f32.xlu0 %v1092
        %v1094 = vpop.xlane.xlu0 %1093
        %v1095 = vadd.f32 %v738, %v739
        %v1096 = vadd.f32 %v1095, %v740
        %1097 = vadd.xlane.f32.xlu0 %v1096
        %v1098 = vpop.xlane.xlu0 %1097
        %v1099 = vadd.f32 %v741, %v742
        %v1100 = vadd.f32 %v1099, %v743
        %1101 = vadd.xlane.f32.xlu0 %v1100
        %v1102 = vpop.xlane.xlu0 %1101
        %v1103 = vadd.f32 %v744, %v745
        %v1104 = vadd.f32 %v1103, %v746
        %1105 = vadd.xlane.f32.xlu0 %v1104
        %v1106 = vpop.xlane.xlu0 %1105
        %v1107 = vadd.f32 %v747, %v748
        %v1108 = vadd.f32 %v1107, %v749
        %1109 = vadd.xlane.f32.xlu0 %v1108
        %v1110 = vpop.xlane.xlu0 %1109
        %v1111 = vadd.f32 %v750, %v751
        %v1112 = vadd.f32 %v1111, %v752
        %1113 = vadd.xlane.f32.xlu0 %v1112
        %v1114 = vpop.xlane.xlu0 %1113
        %v1115 = vadd.f32 %v753, %v754
        %v1116 = vadd.f32 %v1115, %v755
        %1117 = vadd.xlane.f32.xlu0 %v1116
        %v1118 = vpop.xlane.xlu0 %1117
        %v1119 = vadd.f32 %v756, %v757
        %v1120 = vadd.f32 %v1119, %v758
        %1121 = vadd.xlane.f32.xlu0 %v1120
        %v1122 = vpop.xlane.xlu0 %1121
        %v1123 = vadd.f32 %v759, %v760
        %v1124 = vadd.f32 %v1123, %v761
        %1125 = vadd.xlane.f32.xlu0 %v1124
        %v1126 = vpop.xlane.xlu0 %1125
        %v1127 = vadd.f32 %v762, %v763
        %v1128 = vadd.f32 %v1127, %v764
        %1129 = vadd.xlane.f32.xlu0 %v1128
        %v1130 = vpop.xlane.xlu0 %1129
        %v1131 = vadd.f32 %v765, %v766
        %v1132 = vadd.f32 %v1131, %v767
        %1133 = vadd.xlane.f32.xlu0 %v1132
        %v1134 = vpop.xlane.xlu0 %1133
        %v1135 = vadd.f32 %v768, %v769
        %v1136 = vadd.f32 %v1135, %v770
        %1137 = vadd.xlane.f32.xlu0 %v1136
        %v1138 = vpop.xlane.xlu0 %1137
        %v1139 = vadd.f32 %v771, %v772
        %v1140 = vadd.f32 %v1139, %v773
        %1141 = vadd.xlane.f32.xlu0 %v1140
        %v1142 = vpop.xlane.xlu0 %1141
        %v1143 = vadd.f32 %v774, %v775
        %v1144 = vadd.f32 %v1143, %v776
        %1145 = vadd.xlane.f32.xlu0 %v1144
        %v1146 = vpop.xlane.xlu0 %1145
        %v1147 = vadd.f32 %v777, %v778
        %v1148 = vadd.f32 %v1147, %v779
        %1149 = vadd.xlane.f32.xlu0 %v1148
        %v1150 = vpop.xlane.xlu0 %1149
        %v1151 = vadd.f32 %v780, %v781
        %v1152 = vadd.f32 %v1151, %v782
        %1153 = vadd.xlane.f32.xlu0 %v1152
        %v1154 = vpop.xlane.xlu0 %1153
        %v1155 = vadd.f32 %v783, %v784
        %v1156 = vadd.f32 %v1155, %v785
        %1157 = vadd.xlane.f32.xlu0 %v1156
        %v1158 = vpop.xlane.xlu0 %1157
        %v1159 = vadd.f32 %v786, %v787
        %v1160 = vadd.f32 %v1159, %v788
        %1161 = vadd.xlane.f32.xlu0 %v1160
        %v1162 = vpop.xlane.xlu0 %1161
        %v1163 = vadd.f32 %v789, %v790
        %v1164 = vadd.f32 %v1163, %v791
        %1165 = vadd.xlane.f32.xlu0 %v1164
        %v1166 = vpop.xlane.xlu0 %1165
        %v1167 = vadd.f32 %v792, %v793
        %v1168 = vadd.f32 %v1167, %v794
        %1169 = vadd.xlane.f32.xlu0 %v1168
        %v1170 = vpop.xlane.xlu0 %1169
        %v1171 = vadd.f32 %v795, %v796
        %v1172 = vadd.f32 %v1171, %v797
        %1173 = vadd.xlane.f32.xlu0 %v1172
        %v1174 = vpop.xlane.xlu0 %1173
        %v1175 = vadd.f32 %v798, %v799
        %v1176 = vadd.f32 %v1175, %v800
        %1177 = vadd.xlane.f32.xlu0 %v1176
        %v1178 = vpop.xlane.xlu0 %1177
        %v1179 = vadd.f32 %v801, %v802
        %v1180 = vadd.f32 %v1179, %v803
        %1181 = vadd.xlane.f32.xlu0 %v1180
        %v1182 = vpop.xlane.xlu0 %1181
        %v1183 = vadd.f32 %v804, %v805
        %v1184 = vadd.f32 %v1183, %v806
        %1185 = vadd.xlane.f32.xlu0 %v1184
        %v1186 = vpop.xlane.xlu0 %1185
        %v1187 = vadd.f32 %v807, %v808
        %v1188 = vadd.f32 %v1187, %v809
        %1189 = vadd.xlane.f32.xlu0 %v1188
        %v1190 = vpop.xlane.xlu0 %1189
        %v1191 = vadd.f32 %v810, %v811
        %v1192 = vadd.f32 %v1191, %v812
        %1193 = vadd.xlane.f32.xlu0 %v1192
        %v1194 = vpop.xlane.xlu0 %1193
        %v1195 = vadd.f32 %v813, %v814
        %v1196 = vadd.f32 %v1195, %v815
        %1197 = vadd.xlane.f32.xlu0 %v1196
        %v1198 = vpop.xlane.xlu0 %1197
        %v1199 = vadd.f32 %v816, %v817
        %v1200 = vadd.f32 %v1199, %v818
        %1201 = vadd.xlane.f32.xlu0 %v1200
        %v1202 = vpop.xlane.xlu0 %1201
        %v1299 = vlaneseq
        %v1300 = vand.u32 %v1299, 127
        %v1301 = vlaneseq
        %v1302 = vshrl.u32 %v1301, 7
        %v1303 = vsub.s32 %v1300, %v1302
        %v1304 = vrot.slane %v822, %v1303
        %v1305 = vadd.s32 %v1300, 4294967288
        %v1306 = vlaneseq
        %v1307 = vshrl.u32 %v1306, 7
        %v1308 = vsub.s32 %v1305, %v1307
        %v1309 = vrot.slane %v826, %v1308
        %vm1310 = vcmask 130112
        %v1311 = vsel %vm1310, %v1309, %v1304
        %v1312 = vadd.s32 %v1300, 4294967280
        %v1313 = vlaneseq
        %v1314 = vshrl.u32 %v1313, 7
        %v1315 = vsub.s32 %v1312, %v1314
        %v1316 = vrot.slane %v830, %v1315
        %vm1317 = vcmask 195712
        %v1318 = vsel %vm1317, %v1316, %v1311
        %v1319 = vadd.s32 %v1300, 4294967272
        %v1320 = vlaneseq
        %v1321 = vshrl.u32 %v1320, 7
        %v1322 = vsub.s32 %v1319, %v1321
        %v1323 = vrot.slane %v834, %v1322
        %vm1324 = vcmask 261312
        %v1325 = vsel %vm1324, %v1323, %v1318
        %v1326 = vadd.s32 %v1300, 4294967264
        %v1327 = vlaneseq
        %v1328 = vshrl.u32 %v1327, 7
        %v1329 = vsub.s32 %v1326, %v1328
        %v1330 = vrot.slane %v838, %v1329
        %vm1331 = vcmask 326912
        %v1332 = vsel %vm1331, %v1330, %v1325
        %v1333 = vadd.s32 %v1300, 4294967256
        %v1334 = vlaneseq
        %v1335 = vshrl.u32 %v1334, 7
        %v1336 = vsub.s32 %v1333, %v1335
        %v1337 = vrot.slane %v842, %v1336
        %vm1338 = vcmask 392512
        %v1339 = vsel %vm1338, %v1337, %v1332
        %v1340 = vadd.s32 %v1300, 4294967248
        %v1341 = vlaneseq
        %v1342 = vshrl.u32 %v1341, 7
        %v1343 = vsub.s32 %v1340, %v1342
        %v1344 = vrot.slane %v846, %v1343
        %vm1345 = vcmask 458112
        %v1346 = vsel %vm1345, %v1344, %v1339
        %v1347 = vadd.s32 %v1300, 4294967240
        %v1348 = vlaneseq
        %v1349 = vshrl.u32 %v1348, 7
        %v1350 = vsub.s32 %v1347, %v1349
        %v1351 = vrot.slane %v850, %v1350
        %vm1352 = vcmask 523712
        %v1353 = vsel %vm1352, %v1351, %v1346
        %v1354 = vadd.s32 %v1300, 4294967232
        %v1355 = vlaneseq
        %v1356 = vshrl.u32 %v1355, 7
        %v1357 = vsub.s32 %v1354, %v1356
        %v1358 = vrot.slane %v854, %v1357
        %vm1359 = vcmask 589312
        %v1360 = vsel %vm1359, %v1358, %v1353
        %v1361 = vadd.s32 %v1300, 4294967224
        %v1362 = vlaneseq
        %v1363 = vshrl.u32 %v1362, 7
        %v1364 = vsub.s32 %v1361, %v1363
        %v1365 = vrot.slane %v858, %v1364
        %vm1366 = vcmask 654912
        %v1367 = vsel %vm1366, %v1365, %v1360
        %v1368 = vadd.s32 %v1300, 4294967216
        %v1369 = vlaneseq
        %v1370 = vshrl.u32 %v1369, 7
        %v1371 = vsub.s32 %v1368, %v1370
        %v1372 = vrot.slane %v862, %v1371
        %vm1373 = vcmask 720512
        %v1374 = vsel %vm1373, %v1372, %v1367
        %v1375 = vadd.s32 %v1300, 4294967208
        %v1376 = vlaneseq
        %v1377 = vshrl.u32 %v1376, 7
        %v1378 = vsub.s32 %v1375, %v1377
        %v1379 = vrot.slane %v866, %v1378
        %vm1380 = vcmask 786112
        %v1381 = vsel %vm1380, %v1379, %v1374
        %v1382 = vlaneseq
        %v1383 = vshrl.u32 %v1382, 7
        %v1384 = vsub.s32 %v1300, %v1383
        %v1385 = vrot.slane %v870, %v1384
        %v1386 = vlaneseq
        %v1387 = vshrl.u32 %v1386, 7
        %v1388 = vsub.s32 %v1305, %v1387
        %v1389 = vrot.slane %v874, %v1388
        %v1390 = vsel %vm1310, %v1389, %v1385
        %v1391 = vlaneseq
        %v1392 = vshrl.u32 %v1391, 7
        %v1393 = vsub.s32 %v1312, %v1392
        %v1394 = vrot.slane %v878, %v1393
        %v1395 = vsel %vm1317, %v1394, %v1390
        %v1396 = vlaneseq
        %v1397 = vshrl.u32 %v1396, 7
        %v1398 = vsub.s32 %v1319, %v1397
        %v1399 = vrot.slane %v882, %v1398
        %v1400 = vsel %vm1324, %v1399, %v1395
        %v1401 = vlaneseq
        %v1402 = vshrl.u32 %v1401, 7
        %v1403 = vsub.s32 %v1326, %v1402
        %v1404 = vrot.slane %v886, %v1403
        %v1405 = vsel %vm1331, %v1404, %v1400
        %v1406 = vlaneseq
        %v1407 = vshrl.u32 %v1406, 7
        %v1408 = vsub.s32 %v1333, %v1407
        %v1409 = vrot.slane %v890, %v1408
        %v1410 = vsel %vm1338, %v1409, %v1405
        %v1411 = vlaneseq
        %v1412 = vshrl.u32 %v1411, 7
        %v1413 = vsub.s32 %v1340, %v1412
        %v1414 = vrot.slane %v894, %v1413
        %v1415 = vsel %vm1345, %v1414, %v1410
        %v1416 = vlaneseq
        %v1417 = vshrl.u32 %v1416, 7
        %v1418 = vsub.s32 %v1347, %v1417
        %v1419 = vrot.slane %v898, %v1418
        %v1420 = vsel %vm1352, %v1419, %v1415
        %v1421 = vlaneseq
        %v1422 = vshrl.u32 %v1421, 7
        %v1423 = vsub.s32 %v1354, %v1422
        %v1424 = vrot.slane %v902, %v1423
        %v1425 = vsel %vm1359, %v1424, %v1420
        %v1426 = vlaneseq
        %v1427 = vshrl.u32 %v1426, 7
        %v1428 = vsub.s32 %v1361, %v1427
        %v1429 = vrot.slane %v906, %v1428
        %v1430 = vsel %vm1366, %v1429, %v1425
        %v1431 = vlaneseq
        %v1432 = vshrl.u32 %v1431, 7
        %v1433 = vsub.s32 %v1368, %v1432
        %v1434 = vrot.slane %v910, %v1433
        %v1435 = vsel %vm1373, %v1434, %v1430
        %v1436 = vlaneseq
        %v1437 = vshrl.u32 %v1436, 7
        %v1438 = vsub.s32 %v1375, %v1437
        %v1439 = vrot.slane %v914, %v1438
        %v1440 = vsel %vm1380, %v1439, %v1435
        %v1441 = vlaneseq
        %v1442 = vshrl.u32 %v1441, 7
        %v1443 = vsub.s32 %v1300, %v1442
        %v1444 = vrot.slane %v918, %v1443
        %v1445 = vlaneseq
        %v1446 = vshrl.u32 %v1445, 7
        %v1447 = vsub.s32 %v1305, %v1446
        %v1448 = vrot.slane %v922, %v1447
        %v1449 = vsel %vm1310, %v1448, %v1444
        %v1450 = vlaneseq
        %v1451 = vshrl.u32 %v1450, 7
        %v1452 = vsub.s32 %v1312, %v1451
        %v1453 = vrot.slane %v926, %v1452
        %v1454 = vsel %vm1317, %v1453, %v1449
        %v1455 = vlaneseq
        %v1456 = vshrl.u32 %v1455, 7
        %v1457 = vsub.s32 %v1319, %v1456
        %v1458 = vrot.slane %v930, %v1457
        %v1459 = vsel %vm1324, %v1458, %v1454
        %v1460 = vlaneseq
        %v1461 = vshrl.u32 %v1460, 7
        %v1462 = vsub.s32 %v1326, %v1461
        %v1463 = vrot.slane %v934, %v1462
        %v1464 = vsel %vm1331, %v1463, %v1459
        %v1465 = vlaneseq
        %v1466 = vshrl.u32 %v1465, 7
        %v1467 = vsub.s32 %v1333, %v1466
        %v1468 = vrot.slane %v938, %v1467
        %v1469 = vsel %vm1338, %v1468, %v1464
        %v1470 = vlaneseq
        %v1471 = vshrl.u32 %v1470, 7
        %v1472 = vsub.s32 %v1340, %v1471
        %v1473 = vrot.slane %v942, %v1472
        %v1474 = vsel %vm1345, %v1473, %v1469
        %v1475 = vlaneseq
        %v1476 = vshrl.u32 %v1475, 7
        %v1477 = vsub.s32 %v1347, %v1476
        %v1478 = vrot.slane %v946, %v1477
        %v1479 = vsel %vm1352, %v1478, %v1474
        %v1480 = vlaneseq
        %v1481 = vshrl.u32 %v1480, 7
        %v1482 = vsub.s32 %v1354, %v1481
        %v1483 = vrot.slane %v950, %v1482
        %v1484 = vsel %vm1359, %v1483, %v1479
        %v1485 = vlaneseq
        %v1486 = vshrl.u32 %v1485, 7
        %v1487 = vsub.s32 %v1361, %v1486
        %v1488 = vrot.slane %v954, %v1487
        %v1489 = vsel %vm1366, %v1488, %v1484
        %v1490 = vlaneseq
        %v1491 = vshrl.u32 %v1490, 7
        %v1492 = vsub.s32 %v1368, %v1491
        %v1493 = vrot.slane %v958, %v1492
        %v1494 = vsel %vm1373, %v1493, %v1489
        %v1495 = vlaneseq
        %v1496 = vshrl.u32 %v1495, 7
        %v1497 = vsub.s32 %v1375, %v1496
        %v1498 = vrot.slane %v962, %v1497
        %v1499 = vsel %vm1380, %v1498, %v1494
        %v1500 = vlaneseq
        %v1501 = vshrl.u32 %v1500, 7
        %v1502 = vsub.s32 %v1300, %v1501
        %v1503 = vrot.slane %v966, %v1502
        %v1504 = vlaneseq
        %v1505 = vshrl.u32 %v1504, 7
        %v1506 = vsub.s32 %v1305, %v1505
        %v1507 = vrot.slane %v970, %v1506
        %v1508 = vsel %vm1310, %v1507, %v1503
        %v1509 = vlaneseq
        %v1510 = vshrl.u32 %v1509, 7
        %v1511 = vsub.s32 %v1312, %v1510
        %v1512 = vrot.slane %v974, %v1511
        %v1513 = vsel %vm1317, %v1512, %v1508
        %v1514 = vlaneseq
        %v1515 = vshrl.u32 %v1514, 7
        %v1516 = vsub.s32 %v1319, %v1515
        %v1517 = vrot.slane %v978, %v1516
        %v1518 = vsel %vm1324, %v1517, %v1513
        %v1519 = vlaneseq
        %v1520 = vshrl.u32 %v1519, 7
        %v1521 = vsub.s32 %v1326, %v1520
        %v1522 = vrot.slane %v982, %v1521
        %v1523 = vsel %vm1331, %v1522, %v1518
        %v1524 = vlaneseq
        %v1525 = vshrl.u32 %v1524, 7
        %v1526 = vsub.s32 %v1333, %v1525
        %v1527 = vrot.slane %v986, %v1526
        %v1528 = vsel %vm1338, %v1527, %v1523
        %v1529 = vlaneseq
        %v1530 = vshrl.u32 %v1529, 7
        %v1531 = vsub.s32 %v1340, %v1530
        %v1532 = vrot.slane %v990, %v1531
        %v1533 = vsel %vm1345, %v1532, %v1528
        %v1534 = vlaneseq
        %v1535 = vshrl.u32 %v1534, 7
        %v1536 = vsub.s32 %v1347, %v1535
        %v1537 = vrot.slane %v994, %v1536
        %v1538 = vsel %vm1352, %v1537, %v1533
        %v1539 = vlaneseq
        %v1540 = vshrl.u32 %v1539, 7
        %v1541 = vsub.s32 %v1354, %v1540
        %v1542 = vrot.slane %v998, %v1541
        %v1543 = vsel %vm1359, %v1542, %v1538
        %v1544 = vlaneseq
        %v1545 = vshrl.u32 %v1544, 7
        %v1546 = vsub.s32 %v1361, %v1545
        %v1547 = vrot.slane %v1002, %v1546
        %v1548 = vsel %vm1366, %v1547, %v1543
        %v1549 = vlaneseq
        %v1550 = vshrl.u32 %v1549, 7
        %v1551 = vsub.s32 %v1368, %v1550
        %v1552 = vrot.slane %v1006, %v1551
        %v1553 = vsel %vm1373, %v1552, %v1548
        %v1554 = vlaneseq
        %v1555 = vshrl.u32 %v1554, 7
        %v1556 = vsub.s32 %v1375, %v1555
        %v1557 = vrot.slane %v1010, %v1556
        %v1558 = vsel %vm1380, %v1557, %v1553
        %v1559 = vlaneseq
        %v1560 = vshrl.u32 %v1559, 7
        %v1561 = vsub.s32 %v1300, %v1560
        %v1562 = vrot.slane %v1014, %v1561
        %v1563 = vlaneseq
        %v1564 = vshrl.u32 %v1563, 7
        %v1565 = vsub.s32 %v1305, %v1564
        %v1566 = vrot.slane %v1018, %v1565
        %v1567 = vsel %vm1310, %v1566, %v1562
        %v1568 = vlaneseq
        %v1569 = vshrl.u32 %v1568, 7
        %v1570 = vsub.s32 %v1312, %v1569
        %v1571 = vrot.slane %v1022, %v1570
        %v1572 = vsel %vm1317, %v1571, %v1567
        %v1573 = vlaneseq
        %v1574 = vshrl.u32 %v1573, 7
        %v1575 = vsub.s32 %v1319, %v1574
        %v1576 = vrot.slane %v1026, %v1575
        %v1577 = vsel %vm1324, %v1576, %v1572
        %v1578 = vlaneseq
        %v1579 = vshrl.u32 %v1578, 7
        %v1580 = vsub.s32 %v1326, %v1579
        %v1581 = vrot.slane %v1030, %v1580
        %v1582 = vsel %vm1331, %v1581, %v1577
        %v1583 = vlaneseq
        %v1584 = vshrl.u32 %v1583, 7
        %v1585 = vsub.s32 %v1333, %v1584
        %v1586 = vrot.slane %v1034, %v1585
        %v1587 = vsel %vm1338, %v1586, %v1582
        %v1588 = vlaneseq
        %v1589 = vshrl.u32 %v1588, 7
        %v1590 = vsub.s32 %v1340, %v1589
        %v1591 = vrot.slane %v1038, %v1590
        %v1592 = vsel %vm1345, %v1591, %v1587
        %v1593 = vlaneseq
        %v1594 = vshrl.u32 %v1593, 7
        %v1595 = vsub.s32 %v1347, %v1594
        %v1596 = vrot.slane %v1042, %v1595
        %v1597 = vsel %vm1352, %v1596, %v1592
        %v1598 = vlaneseq
        %v1599 = vshrl.u32 %v1598, 7
        %v1600 = vsub.s32 %v1354, %v1599
        %v1601 = vrot.slane %v1046, %v1600
        %v1602 = vsel %vm1359, %v1601, %v1597
        %v1603 = vlaneseq
        %v1604 = vshrl.u32 %v1603, 7
        %v1605 = vsub.s32 %v1361, %v1604
        %v1606 = vrot.slane %v1050, %v1605
        %v1607 = vsel %vm1366, %v1606, %v1602
        %v1608 = vlaneseq
        %v1609 = vshrl.u32 %v1608, 7
        %v1610 = vsub.s32 %v1368, %v1609
        %v1611 = vrot.slane %v1054, %v1610
        %v1612 = vsel %vm1373, %v1611, %v1607
        %v1613 = vlaneseq
        %v1614 = vshrl.u32 %v1613, 7
        %v1615 = vsub.s32 %v1375, %v1614
        %v1616 = vrot.slane %v1058, %v1615
        %v1617 = vsel %vm1380, %v1616, %v1612
        %v1618 = vlaneseq
        %v1619 = vshrl.u32 %v1618, 7
        %v1620 = vsub.s32 %v1300, %v1619
        %v1621 = vrot.slane %v1062, %v1620
        %v1622 = vlaneseq
        %v1623 = vshrl.u32 %v1622, 7
        %v1624 = vsub.s32 %v1305, %v1623
        %v1625 = vrot.slane %v1066, %v1624
        %v1626 = vsel %vm1310, %v1625, %v1621
        %v1627 = vlaneseq
        %v1628 = vshrl.u32 %v1627, 7
        %v1629 = vsub.s32 %v1312, %v1628
        %v1630 = vrot.slane %v1070, %v1629
        %v1631 = vsel %vm1317, %v1630, %v1626
        %v1632 = vlaneseq
        %v1633 = vshrl.u32 %v1632, 7
        %v1634 = vsub.s32 %v1319, %v1633
        %v1635 = vrot.slane %v1074, %v1634
        %v1636 = vsel %vm1324, %v1635, %v1631
        %v1637 = vlaneseq
        %v1638 = vshrl.u32 %v1637, 7
        %v1639 = vsub.s32 %v1326, %v1638
        %v1640 = vrot.slane %v1078, %v1639
        %v1641 = vsel %vm1331, %v1640, %v1636
        %v1642 = vlaneseq
        %v1643 = vshrl.u32 %v1642, 7
        %v1644 = vsub.s32 %v1333, %v1643
        %v1645 = vrot.slane %v1082, %v1644
        %v1646 = vsel %vm1338, %v1645, %v1641
        %v1647 = vlaneseq
        %v1648 = vshrl.u32 %v1647, 7
        %v1649 = vsub.s32 %v1340, %v1648
        %v1650 = vrot.slane %v1086, %v1649
        %v1651 = vsel %vm1345, %v1650, %v1646
        %v1652 = vlaneseq
        %v1653 = vshrl.u32 %v1652, 7
        %v1654 = vsub.s32 %v1347, %v1653
        %v1655 = vrot.slane %v1090, %v1654
        %v1656 = vsel %vm1352, %v1655, %v1651
        %v1657 = vlaneseq
        %v1658 = vshrl.u32 %v1657, 7
        %v1659 = vsub.s32 %v1354, %v1658
        %v1660 = vrot.slane %v1094, %v1659
        %v1661 = vsel %vm1359, %v1660, %v1656
        %v1662 = vlaneseq
        %v1663 = vshrl.u32 %v1662, 7
        %v1664 = vsub.s32 %v1361, %v1663
        %v1665 = vrot.slane %v1098, %v1664
        %v1666 = vsel %vm1366, %v1665, %v1661
        %v1667 = vlaneseq
        %v1668 = vshrl.u32 %v1667, 7
        %v1669 = vsub.s32 %v1368, %v1668
        %v1670 = vrot.slane %v1102, %v1669
        %v1671 = vsel %vm1373, %v1670, %v1666
        %v1672 = vlaneseq
        %v1673 = vshrl.u32 %v1672, 7
        %v1674 = vsub.s32 %v1375, %v1673
        %v1675 = vrot.slane %v1106, %v1674
        %v1676 = vsel %vm1380, %v1675, %v1671
        %v1677 = vlaneseq
        %v1678 = vshrl.u32 %v1677, 7
        %v1679 = vsub.s32 %v1300, %v1678
        %v1680 = vrot.slane %v1110, %v1679
        %v1681 = vlaneseq
        %v1682 = vshrl.u32 %v1681, 7
        %v1683 = vsub.s32 %v1305, %v1682
        %v1684 = vrot.slane %v1114, %v1683
        %v1685 = vsel %vm1310, %v1684, %v1680
        %v1686 = vlaneseq
        %v1687 = vshrl.u32 %v1686, 7
        %v1688 = vsub.s32 %v1312, %v1687
        %v1689 = vrot.slane %v1118, %v1688
        %v1690 = vsel %vm1317, %v1689, %v1685
        %v1691 = vlaneseq
        %v1692 = vshrl.u32 %v1691, 7
        %v1693 = vsub.s32 %v1319, %v1692
        %v1694 = vrot.slane %v1122, %v1693
        %v1695 = vsel %vm1324, %v1694, %v1690
        %v1696 = vlaneseq
        %v1697 = vshrl.u32 %v1696, 7
        %v1698 = vsub.s32 %v1326, %v1697
        %v1699 = vrot.slane %v1126, %v1698
        %v1700 = vsel %vm1331, %v1699, %v1695
        %v1701 = vlaneseq
        %v1702 = vshrl.u32 %v1701, 7
        %v1703 = vsub.s32 %v1333, %v1702
        %v1704 = vrot.slane %v1130, %v1703
        %v1705 = vsel %vm1338, %v1704, %v1700
        %v1706 = vlaneseq
        %v1707 = vshrl.u32 %v1706, 7
        %v1708 = vsub.s32 %v1340, %v1707
        %v1709 = vrot.slane %v1134, %v1708
        %v1710 = vsel %vm1345, %v1709, %v1705
        %v1711 = vlaneseq
        %v1712 = vshrl.u32 %v1711, 7
        %v1713 = vsub.s32 %v1347, %v1712
        %v1714 = vrot.slane %v1138, %v1713
        %v1715 = vsel %vm1352, %v1714, %v1710
        %v1716 = vlaneseq
        %v1717 = vshrl.u32 %v1716, 7
        %v1718 = vsub.s32 %v1354, %v1717
        %v1719 = vrot.slane %v1142, %v1718
        %v1720 = vsel %vm1359, %v1719, %v1715
        %v1721 = vlaneseq
        %v1722 = vshrl.u32 %v1721, 7
        %v1723 = vsub.s32 %v1361, %v1722
        %v1724 = vrot.slane %v1146, %v1723
        %v1725 = vsel %vm1366, %v1724, %v1720
        %v1726 = vlaneseq
        %v1727 = vshrl.u32 %v1726, 7
        %v1728 = vsub.s32 %v1368, %v1727
        %v1729 = vrot.slane %v1150, %v1728
        %v1730 = vsel %vm1373, %v1729, %v1725
        %v1731 = vlaneseq
        %v1732 = vshrl.u32 %v1731, 7
        %v1733 = vsub.s32 %v1375, %v1732
        %v1734 = vrot.slane %v1154, %v1733
        %v1735 = vsel %vm1380, %v1734, %v1730
        %v1736 = vlaneseq
        %v1737 = vshrl.u32 %v1736, 7
        %v1738 = vsub.s32 %v1300, %v1737
        %v1739 = vrot.slane %v1158, %v1738
        %v1740 = vlaneseq
        %v1741 = vshrl.u32 %v1740, 7
        %v1742 = vsub.s32 %v1305, %v1741
        %v1743 = vrot.slane %v1162, %v1742
        %v1744 = vsel %vm1310, %v1743, %v1739
        %v1745 = vlaneseq
        %v1746 = vshrl.u32 %v1745, 7
        %v1747 = vsub.s32 %v1312, %v1746
        %v1748 = vrot.slane %v1166, %v1747
        %v1749 = vsel %vm1317, %v1748, %v1744
        %v1750 = vlaneseq
        %v1751 = vshrl.u32 %v1750, 7
        %v1752 = vsub.s32 %v1319, %v1751
        %v1753 = vrot.slane %v1170, %v1752
        %v1754 = vsel %vm1324, %v1753, %v1749
        %v1755 = vlaneseq
        %v1756 = vshrl.u32 %v1755, 7
        %v1757 = vsub.s32 %v1326, %v1756
        %v1758 = vrot.slane %v1174, %v1757
        %v1759 = vsel %vm1331, %v1758, %v1754
        %v1760 = vlaneseq
        %v1761 = vshrl.u32 %v1760, 7
        %v1762 = vsub.s32 %v1333, %v1761
        %v1763 = vrot.slane %v1178, %v1762
        %v1764 = vsel %vm1338, %v1763, %v1759
        %v1765 = vlaneseq
        %v1766 = vshrl.u32 %v1765, 7
        %v1767 = vsub.s32 %v1340, %v1766
        %v1768 = vrot.slane %v1182, %v1767
        %v1769 = vsel %vm1345, %v1768, %v1764
        %v1770 = vlaneseq
        %v1771 = vshrl.u32 %v1770, 7
        %v1772 = vsub.s32 %v1347, %v1771
        %v1773 = vrot.slane %v1186, %v1772
        %v1774 = vsel %vm1352, %v1773, %v1769
        %v1775 = vlaneseq
        %v1776 = vshrl.u32 %v1775, 7
        %v1777 = vsub.s32 %v1354, %v1776
        %v1778 = vrot.slane %v1190, %v1777
        %v1779 = vsel %vm1359, %v1778, %v1774
        %v1780 = vlaneseq
        %v1781 = vshrl.u32 %v1780, 7
        %v1782 = vsub.s32 %v1361, %v1781
        %v1783 = vrot.slane %v1194, %v1782
        %v1784 = vsel %vm1366, %v1783, %v1779
        %v1785 = vlaneseq
        %v1786 = vshrl.u32 %v1785, 7
        %v1787 = vsub.s32 %v1368, %v1786
        %v1788 = vrot.slane %v1198, %v1787
        %v1789 = vsel %vm1373, %v1788, %v1784
        %v1790 = vlaneseq
        %v1791 = vshrl.u32 %v1790, 7
        %v1792 = vsub.s32 %v1375, %v1791
        %v1793 = vrot.slane %v1202, %v1792
        %v1794 = vsel %vm1380, %v1793, %v1789
        %vm1795 = vcmask 1041409
        %v1796 = vsel %vm1795, %v1440, %v1381
        %vm1797 = vcmask 1042434
        %v1798 = vsel %vm1797, %v1499, %v1796
        %vm1799 = vcmask 1043459
        %v1800 = vsel %vm1799, %v1558, %v1798
        %vm1801 = vcmask 1044484
        %v1802 = vsel %vm1801, %v1617, %v1800
        %vm1803 = vcmask 1045509
        %v1804 = vsel %vm1803, %v1676, %v1802
        %vm1805 = vcmask 1046534
        %v1806 = vsel %vm1805, %v1735, %v1804
        %vm1807 = vcmask 1047559
        %v1808 = vsel %vm1807, %v1794, %v1806
        %vm1810 = vcmask 785408
        %v1811 = vsel %vm1810, %v1808, 0.0
        %1812 = vadd.xlane.f32.xlu0 %v1811
        %v1813 = vpop.xlane.xlu0 %1812
        %s1814 = sld [smem:[#allocation2]]
        %v1815 = vstv %s1814
        %v1816 = vadd.f32 %v1813, %v1815
        %vm1817 = vcmask 7168
        %1818 = vst.msk [vmem:[%s206] sm:$0xff] %vm1817, %v1816
        %p1819 = scmp.lt.s32.totalorder %s19, 1
        %s1820 = scalar_select %p1819, %s19, 1
        %s1821 = smul.addr %s1820, 8
        %s1822 = scalar_lea.vmem %s3, %s1821
        // Predicated region
        $region41: #{tpu_custom_call.1} parent=31 // pred_check
          %p1823 = pneg %p105
        $region42: #{tpu_custom_call.1} parent=31 // pred_check_branch
          %1825 = sbr.rel (%p1823) target = $region44
        $region43: #{tpu_custom_call.1} parent=31 // pred_region
          _
        $region44: #{tpu_custom_call.1} parent=31 // pred_fallthru
          _
      $region32: #{tpu_custom_call.1} parent=5 // pred_fallthru
        _
      %p1826 = scmp.le.s32.totalorder 2, %s14
      // Predicated region
      $region45: #{tpu_custom_call.1} parent=5 // pred_check
        %p1827 = pneg %p1826
      $region46: #{tpu_custom_call.1} parent=5 // pred_check_branch
        %1829 = sbr.rel (%p1827) target = $region48
      $region47: #{tpu_custom_call.1} parent=5 // pred_region
        %s1830 = ssub.s32 %s14, 2
        // Predicated region
        $region49: #{tpu_custom_call.1} parent=47 // pred_check
          %p1831 = pneg %p111
        $region50: #{tpu_custom_call.1} parent=47 // pred_check_branch
          %1833 = sbr.rel (%p1831) target = $region52
        $region51: #{tpu_custom_call.1} parent=47 // pred_region
          %p1834 = scmp.lt.s32.totalorder %s20, 1
          %s1835 = scalar_select %p1834, %s20, 1
          %s1836 = smul.addr %s1835, 8
          %s1837 = scalar_lea.vmem %s3, %s1836
        $region52: #{tpu_custom_call.1} parent=47 // pred_fallthru
          _
      $region48: #{tpu_custom_call.1} parent=5 // pred_fallthru
        _
    $region6: #{tpu_custom_call.1} parent=1 // loop_footer
      %s18 = sadd.s32 1, %s14
    $region7: #{tpu_custom_call.1} parent=1 // loop_footer_branch
      %13 = sbr.rel target = $region3
    $region8: #{tpu_custom_call.1} parent=1 // loop_exit
      _
    %1838 = vsyncpa [#allocation4], 1
    %s1839 = scalar_lea.sflag [#allocation4], 1
    %1840 = vsyncpa %s1839, 1
    %1841 = vsyncpa [#allocation6], 1

</llo_original>
